<compile_context>
chip_gen: v6e
topology: v6e:2x2x1
jax: 0.10.0
libtpu: 0.0.40
codegen_flags: <defaults>
</compile_context>

<pallas_src>
import functools

import jax
import jax.numpy as jnp
from jax.experimental import pallas as pl
from jax.experimental.pallas import tpu as pltpu


# ----------------------------------------------------------------------------
# Kernel 1: fused Conv2d(3x3, pad=1, BN-folded) + ReLU + MaxPool(2,2)
# One grid step = one batch element (demo-scale images fit VMEM easily).
# ----------------------------------------------------------------------------
def _conv_bn_relu_pool_kernel(x_ref, w_ref, b_ref, o_ref, xp_ref, y_ref,
                              *, H, W, Cin, Cout):
    # x_ref : (1, H, W, Cin)          bf16 input tile
    # w_ref : (9*Cin, Cout)           bf16 BN-folded weight (im2col layout)
    # b_ref : (1, Cout)               f32  BN-folded bias
    # o_ref : (1, H//2, W//2, Cout)   bf16 output tile
    # xp_ref: (H+2, W+2, Cin)         bf16 VMEM scratch (halo-padded input)
    # y_ref : (H, W, Cout)            f32  VMEM scratch (pre-pool activation)

    # In-kernel halo padding (no host-side jnp.pad / extra HBM pass).
    xp_ref[...] = jnp.zeros_like(xp_ref)
    xp_ref[1:H + 1, 1:W + 1, :] = x_ref[0]
    xp = xp_ref[...]

    # im2col: one deep-K MXU matmul (K = 9*Cin) instead of 9 shallow ones.
    cols = jnp.concatenate(
        [xp[kh:kh + H, kw:kw + W, :] for kh in range(3) for kw in range(3)],
        axis=-1).reshape(H * W, 9 * Cin)
    acc = jnp.dot(cols, w_ref[...], preferred_element_type=jnp.float32)

    # Bias (BN already folded in) + ReLU, stored to VMEM for strided pooling.
    y_ref[...] = jnp.maximum(acc + b_ref[...], 0.0).reshape(H, W, Cout)

    # 2x2 max-pool, stride 2: strided reads along W, leading-dim split along H
    # (keeps the work on plain VPU max ops, no 5-D reshape relayout).
    yw = jnp.maximum(y_ref[:, pl.ds(0, W // 2, 2), :],
                     y_ref[:, pl.ds(1, W // 2, 2), :])      # (H, W//2, Cout)
    yw4 = yw.reshape(H // 2, 2, W // 2, Cout)
    pooled = jnp.maximum(yw4[:, 0], yw4[:, 1])               # (H//2, W//2, C)
    o_ref[0] = pooled.astype(o_ref.dtype)


def conv_bn_relu_pool(x, w, b):
    # x: (N, H, W, Cin) bf16; w: (9*Cin, Cout) bf16; b: (1, Cout) f32
    N, H, W, Cin = x.shape
    Cout = w.shape[-1]
    assert w.shape[0] == 9 * Cin
    kernel = functools.partial(_conv_bn_relu_pool_kernel,
                               H=H, W=W, Cin=Cin, Cout=Cout)
    return pl.pallas_call(
        kernel,
        out_shape=jax.ShapeDtypeStruct((N, H // 2, W // 2, Cout),
                                       jnp.bfloat16),
        grid=(N,),
        in_specs=[
            pl.BlockSpec((1, H, W, Cin), lambda n: (n, 0, 0, 0)),
            pl.BlockSpec((9 * Cin, Cout), lambda n: (0, 0)),
            pl.BlockSpec((1, Cout), lambda n: (0, 0)),
        ],
        out_specs=pl.BlockSpec((1, H // 2, W // 2, Cout),
                               lambda n: (n, 0, 0, 0)),
        scratch_shapes=[
            pltpu.VMEM((H + 2, W + 2, Cin), jnp.bfloat16),
            pltpu.VMEM((H, W, Cout), jnp.float32),
        ],
        compiler_params=pltpu.CompilerParams(
            dimension_semantics=("parallel",)),
    )(x, w, b)


# ----------------------------------------------------------------------------
# Kernel 2: ConvTranspose2d(kernel=2, stride=2) as a single lane-dense matmul.
# The kernel emits a space-to-depth output out[i, j, (a*2+b)*Cout + c]
#   = x[i, j, :] @ W[:, a, b, c] + bias[c];
# the wrapper performs the spatial interleave with one XLA transpose.
# ----------------------------------------------------------------------------
def _upconv2x2_kernel(x_ref, w_ref, b_ref, o_ref, *, H, W, Cin, C4):
    # x_ref: (1, H, W, Cin) bf16; w_ref: (Cin, C4) bf16; b_ref: (1, C4) f32
    # o_ref: (1, H, W, C4) bf16,  C4 = 4 * Cout_padded (lane dense, >= 128)
    x = x_ref[0].reshape(H * W, Cin)
    y = jnp.dot(x, w_ref[...], preferred_element_type=jnp.float32)
    y = y + b_ref[...]
    o_ref[0] = y.reshape(H, W, C4).astype(o_ref.dtype)


def upconv2x2(x, w_flat, b_flat, num_out=None):
    # x: (N, H, W, Cin) bf16; w_flat: (Cin, 4*Cout_p) bf16; b_flat: (1, 4*Cout_p)
    N, H, W, Cin = x.shape
    C4 = w_flat.shape[-1]
    cout_p = C4 // 4
    kernel = functools.partial(_upconv2x2_kernel, H=H, W=W, Cin=Cin, C4=C4)
    out = pl.pallas_call(
        kernel,
        out_shape=jax.ShapeDtypeStruct((N, H, W, C4), jnp.bfloat16),
        grid=(N,),
        in_specs=[
            pl.BlockSpec((1, H, W, Cin), lambda n: (n, 0, 0, 0)),
            pl.BlockSpec((Cin, C4), lambda n: (0, 0)),
            pl.BlockSpec((1, C4), lambda n: (0, 0)),
        ],
        out_specs=pl.BlockSpec((1, H, W, C4), lambda n: (n, 0, 0, 0)),
        compiler_params=pltpu.CompilerParams(
            dimension_semantics=("parallel",)),
    )(x, w_flat, b_flat)
    # Space-to-depth -> spatial interleave: out[n, 2i+a, 2j+b, c].
    out = out.reshape(N, H, W, 2, 2, cout_p)
    out = out.transpose(0, 1, 3, 2, 4, 5).reshape(N, 2 * H, 2 * W, cout_p)
    if num_out is not None and num_out != cout_p:
        out = out[..., :num_out]     # drop lane padding of the final layer
    return out


# ----------------------------------------------------------------------------
# Parameter init (deterministic, shapes mirror the PyTorch module), with
# BatchNorm folding + im2col / space-to-depth weight packing for the kernels.
# ----------------------------------------------------------------------------
def init_params(key, in_channels, num_classes, eps=1e-5):
    params = {}
    keys = jax.random.split(key, 32)
    ki = iter(keys)

    def conv_block(name, cin, cout):
        fan_in = cin * 9
        w = jax.random.normal(next(ki), (3, 3, cin, cout),
                              jnp.float32) / jnp.sqrt(fan_in)
        b = 0.1 * jax.random.normal(next(ki), (cout,), jnp.float32)
        gamma = 1.0 + 0.1 * jax.random.normal(next(ki), (cout,), jnp.float32)
        beta = 0.1 * jax.random.normal(next(ki), (cout,), jnp.float32)
        mean = 0.1 * jax.random.normal(next(ki), (cout,), jnp.float32)
        var = 1.0 + 0.1 * jnp.abs(jax.random.normal(next(ki), (cout,),
                                                    jnp.float32))
        # Fold inference-mode BatchNorm into the conv weight/bias:
        #   BN(conv(x)) = (w*s) . x + (s*(b - mean) + beta), s = gamma/sqrt(var+eps)
        scale = gamma / jnp.sqrt(var + eps)
        w_f = (w * scale).reshape(9 * cin, cout)        # im2col (kh, kw, ci)
        b_f = (scale * (b - mean) + beta).reshape(1, cout)
        params[f"w{name}"] = w_f.astype(jnp.bfloat16)
        params[f"b{name}"] = b_f

    def upconv_block(name, cin, cout):
        fan_in = cin * 4
        w = jax.random.normal(next(ki), (2, 2, cin, cout),
                              jnp.float32) / jnp.sqrt(fan_in)   # w[a,b,ci,co]
        b = 0.1 * jax.random.normal(next(ki), (cout,), jnp.float32)
        # Pad output channels so the space-to-depth output (4*cout_p lanes)
        # is lane-dense (final layer: 3 -> 32 gives 128 output lanes).
        cout_p = cout if cout % 32 == 0 else ((cout + 31) // 32) * 32
        if cout_p != cout:
            w = jnp.pad(w, ((0, 0), (0, 0), (0, 0), (0, cout_p - cout)))
            b = jnp.pad(b, ((0, cout_p - cout),))
        # Flatten (a, b, ci, co) -> (ci, (a*2+b)*cout_p + co).
        w_flat = jnp.transpose(w, (2, 0, 1, 3)).reshape(cin, 4 * cout_p)
        params[f"uw{name}"] = w_flat.astype(jnp.bfloat16)
        params[f"ub{name}"] = jnp.tile(b, 4).reshape(1, 4 * cout_p)

    conv_block("1", in_channels, 64)
    conv_block("2", 64, 128)
    conv_block("3", 128, 256)
    upconv_block("1", 256, 128)
    upconv_block("2", 128, 64)
    upconv_block("3", 64, num_classes)
    return params


def fcn_forward(x_nhwc, p, num_classes):
    x = x_nhwc.astype(jnp.bfloat16)
    x = conv_bn_relu_pool(x, p["w1"], p["b1"])
    x = conv_bn_relu_pool(x, p["w2"], p["b2"])
    x = conv_bn_relu_pool(x, p["w3"], p["b3"])
    x = upconv2x2(x, p["uw1"], p["ub1"])
    x = upconv2x2(x, p["uw2"], p["ub2"])
    x = upconv2x2(x, p["uw3"], p["ub3"], num_out=num_classes)
    return x.astype(jnp.float32)


if __name__ == "__main__":
    key = jax.random.PRNGKey(0)
    k_params, k_x = jax.random.split(key)

    N, Cin, H, W = 2, 8, 16, 16   # small example consistent with the module
    num_classes = 3

    params = init_params(k_params, Cin, num_classes)

    # PyTorch-style NCHW input, converted to NHWC for the kernels.
    x_nchw = jax.random.normal(k_x, (N, Cin, H, W), jnp.float32)
    x_nhwc = jnp.transpose(x_nchw, (0, 2, 3, 1))

    out_nhwc = fcn_forward(x_nhwc, params, num_classes)
    out_nchw = jnp.transpose(out_nhwc, (0, 3, 1, 2))
    jax.block_until_ready(out_nchw)

    assert out_nchw.shape == (N, num_classes, H, W), out_nchw.shape
    print("KERNEL_OK")
</pallas_src>

<mosaic_0001>
module attributes {stable_mosaic.version = 11 : i64} {
  func.func @_conv_bn_relu_pool_kernel(%arg0: i32, %arg1: memref<1x16x16x8xbf16, #tpu.memory_space<vmem>>, %arg2: memref<72x64xbf16, #tpu.memory_space<vmem>>, %arg3: memref<1x64xf32, #tpu.memory_space<vmem>>, %arg4: memref<1x8x8x64xbf16, #tpu.memory_space<vmem>>, %arg5: memref<18x18x8xbf16, #tpu.memory_space<vmem>>, %arg6: memref<16x16x64xf32, #tpu.memory_space<vmem>>) attributes {dimension_semantics = [#tpu.dimension_semantics<parallel>], iteration_bounds = array<i64: 2>, scalar_prefetch = 0 : i64, scratch_operands = 2 : i64, tpu.core_type = #tpu.core_type<tc>, window_params = [{transform_indices = @transform_0, window_bounds = array<i64: 1, 16, 16, 8>}, {pipeline_mode = #tpu.pipeline_mode<synchronous>, transform_indices = @transform_1, window_bounds = array<i64: 72, 64>}, {pipeline_mode = #tpu.pipeline_mode<synchronous>, transform_indices = @transform_2, window_bounds = array<i64: 1, 64>}, {transform_indices = @transform_3, window_bounds = array<i64: 1, 8, 8, 64>}]} {
    %cst = arith.constant 0.000000e+00 : bf16
    %0 = vector.broadcast %cst : bf16 to vector<18x18x8xbf16>
    %c0 = arith.constant 0 : index
    %c0_0 = arith.constant 0 : index
    %c0_1 = arith.constant 0 : index
    %1 = vector.load %arg5[%c0, %c0_0, %c0_1] : memref<18x18x8xbf16, #tpu.memory_space<vmem>>, vector<18x18x8xbf16>
    tpu.vector_store %arg5[%c0, %c0_0, %c0_1], %0 {strides = array<i32>} : memref<18x18x8xbf16, #tpu.memory_space<vmem>>, vector<18x18x8xbf16>,
    %c0_2 = arith.constant 0 : index
    %c0_3 = arith.constant 0 : index
    %c0_4 = arith.constant 0 : index
    %c0_5 = arith.constant 0 : index
    %2 = vector.load %arg1[%c0_2, %c0_3, %c0_4, %c0_5] : memref<1x16x16x8xbf16, #tpu.memory_space<vmem>>, vector<1x16x16x8xbf16>
    %3 = vector.shape_cast %2 : vector<1x16x16x8xbf16> to vector<16x16x8xbf16>
    %c1 = arith.constant 1 : index
    %c1_6 = arith.constant 1 : index
    %c0_7 = arith.constant 0 : index
    %4 = vector.load %arg5[%c1, %c1_6, %c0_7] : memref<18x18x8xbf16, #tpu.memory_space<vmem>>, vector<16x16x8xbf16>
    tpu.vector_store %arg5[%c1, %c1_6, %c0_7], %3 {strides = array<i32>} : memref<18x18x8xbf16, #tpu.memory_space<vmem>>, vector<16x16x8xbf16>,
    %c0_8 = arith.constant 0 : index
    %c0_9 = arith.constant 0 : index
    %c0_10 = arith.constant 0 : index
    %5 = vector.load %arg5[%c0_8, %c0_9, %c0_10] : memref<18x18x8xbf16, #tpu.memory_space<vmem>>, vector<18x18x8xbf16>
    %6 = vector.extract_strided_slice %5 {offsets = [0, 0, 0], sizes = [16, 16, 8], strides = [1, 1, 1]} : vector<18x18x8xbf16> to vector<16x16x8xbf16>
    %7 = vector.extract_strided_slice %5 {offsets = [0, 1, 0], sizes = [16, 16, 8], strides = [1, 1, 1]} : vector<18x18x8xbf16> to vector<16x16x8xbf16>
    %8 = vector.extract_strided_slice %5 {offsets = [0, 2, 0], sizes = [16, 16, 8], strides = [1, 1, 1]} : vector<18x18x8xbf16> to vector<16x16x8xbf16>
    %9 = vector.extract_strided_slice %5 {offsets = [1, 0, 0], sizes = [16, 16, 8], strides = [1, 1, 1]} : vector<18x18x8xbf16> to vector<16x16x8xbf16>
    %10 = vector.extract_strided_slice %5 {offsets = [1, 1, 0], sizes = [16, 16, 8], strides = [1, 1, 1]} : vector<18x18x8xbf16> to vector<16x16x8xbf16>
    %11 = vector.extract_strided_slice %5 {offsets = [1, 2, 0], sizes = [16, 16, 8], strides = [1, 1, 1]} : vector<18x18x8xbf16> to vector<16x16x8xbf16>
    %12 = vector.extract_strided_slice %5 {offsets = [2, 0, 0], sizes = [16, 16, 8], strides = [1, 1, 1]} : vector<18x18x8xbf16> to vector<16x16x8xbf16>
    %13 = vector.extract_strided_slice %5 {offsets = [2, 1, 0], sizes = [16, 16, 8], strides = [1, 1, 1]} : vector<18x18x8xbf16> to vector<16x16x8xbf16>
    %14 = vector.extract_strided_slice %5 {offsets = [2, 2, 0], sizes = [16, 16, 8], strides = [1, 1, 1]} : vector<18x18x8xbf16> to vector<16x16x8xbf16>
    %15 = tpu.concatenate %6, %7, %8, %9, %10, %11, %12, %13, %14 in 2 : vector<16x16x8xbf16>, vector<16x16x8xbf16>, vector<16x16x8xbf16>, vector<16x16x8xbf16>, vector<16x16x8xbf16>, vector<16x16x8xbf16>, vector<16x16x8xbf16>, vector<16x16x8xbf16>, vector<16x16x8xbf16> -> vector<16x16x72xbf16>
    %16 = vector.shape_cast %15 : vector<16x16x72xbf16> to vector<256x72xbf16>
    %c0_11 = arith.constant 0 : index
    %c0_12 = arith.constant 0 : index
    %17 = vector.load %arg2[%c0_11, %c0_12] : memref<72x64xbf16, #tpu.memory_space<vmem>>, vector<72x64xbf16>
    %cst_13 = arith.constant dense<0.000000e+00> : vector<256x64xf32>
    %18 = tpu.matmul %16, %17, %cst_13 {dimension_numbers = #tpu.dot_dimension_numbers<[1], [0], [0], [1], [0, 0, 1, 1], [], []>} : vector<256x72xbf16>, vector<72x64xbf16>, vector<256x64xf32> -> vector<256x64xf32>
    %c0_14 = arith.constant 0 : index
    %c0_15 = arith.constant 0 : index
    %19 = vector.load %arg3[%c0_14, %c0_15] : memref<1x64xf32, #tpu.memory_space<vmem>>, vector<1x64xf32>
    %20 = vector.broadcast %19 : vector<1x64xf32> to vector<256x64xf32>
    %21 = arith.addf %18, %20 : vector<256x64xf32>
    %cst_16 = arith.constant 0.000000e+00 : f32
    %22 = vector.broadcast %cst_16 : f32 to vector<256x64xf32>
    %23 = arith.maximumf %21, %22 : vector<256x64xf32>
    %24 = vector.shape_cast %23 : vector<256x64xf32> to vector<16x16x64xf32>
    %c0_17 = arith.constant 0 : index
    %c0_18 = arith.constant 0 : index
    %c0_19 = arith.constant 0 : index
    %25 = vector.load %arg6[%c0_17, %c0_18, %c0_19] : memref<16x16x64xf32, #tpu.memory_space<vmem>>, vector<16x16x64xf32>
    tpu.vector_store %arg6[%c0_17, %c0_18, %c0_19], %24 {strides = array<i32>} : memref<16x16x64xf32, #tpu.memory_space<vmem>>, vector<16x16x64xf32>,
    %c0_20 = arith.constant 0 : index
    %c0_21 = arith.constant 0 : index
    %c0_22 = arith.constant 0 : index
    %26 = tpu.strided_load %arg6[%c0_20, %c0_21, %c0_22] {strides = array<i32: 1, 2, 1>} : memref<16x16x64xf32, #tpu.memory_space<vmem>>, vector<16x8x64xf32>
    %c0_23 = arith.constant 0 : index
    %c1_24 = arith.constant 1 : index
    %c0_25 = arith.constant 0 : index
    %27 = tpu.strided_load %arg6[%c0_23, %c1_24, %c0_25] {strides = array<i32: 1, 2, 1>} : memref<16x16x64xf32, #tpu.memory_space<vmem>>, vector<16x8x64xf32>
    %28 = arith.maximumf %26, %27 : vector<16x8x64xf32>
    %29 = vector.shape_cast %28 : vector<16x8x64xf32> to vector<8x2x8x64xf32>
    %30 = vector.extract_strided_slice %29 {offsets = [0, 0, 0, 0], sizes = [8, 1, 8, 64], strides = [1, 1, 1, 1]} : vector<8x2x8x64xf32> to vector<8x1x8x64xf32>
    %31 = vector.shape_cast %30 : vector<8x1x8x64xf32> to vector<8x8x64xf32>
    %32 = vector.extract_strided_slice %29 {offsets = [0, 1, 0, 0], sizes = [8, 1, 8, 64], strides = [1, 1, 1, 1]} : vector<8x2x8x64xf32> to vector<8x1x8x64xf32>
    %33 = vector.shape_cast %32 : vector<8x1x8x64xf32> to vector<8x8x64xf32>
    %34 = arith.maximumf %31, %33 : vector<8x8x64xf32>
    %35 = arith.truncf %34 : vector<8x8x64xf32> to vector<8x8x64xbf16>
    %c0_26 = arith.constant 0 : index
    %c0_27 = arith.constant 0 : index
    %c0_28 = arith.constant 0 : index
    %c0_29 = arith.constant 0 : index
    %36 = vector.load %arg4[%c0_26, %c0_27, %c0_28, %c0_29] : memref<1x8x8x64xbf16, #tpu.memory_space<vmem>>, vector<1x8x8x64xbf16>
    %37 = vector.shape_cast %36 : vector<1x8x8x64xbf16> to vector<8x8x64xbf16>
    %38 = vector.shape_cast %35 : vector<8x8x64xbf16> to vector<1x8x8x64xbf16>
    tpu.vector_store %arg4[%c0_26, %c0_27, %c0_28, %c0_29], %38 {strides = array<i32>} : memref<1x8x8x64xbf16, #tpu.memory_space<vmem>>, vector<1x8x8x64xbf16>,
    return
  }
  func.func @transform_0(%arg0: i32) -> (i32, i32, i32, i32) {
    %c0_i32 = arith.constant 0 : i32
    %c0_i32_0 = arith.constant 0 : i32
    %c0_i32_1 = arith.constant 0 : i32
    %c0_i32_2 = arith.constant 0 : i32
    return %arg0, %c0_i32, %c0_i32_0, %c0_i32_1 : i32, i32, i32, i32
  }
  func.func @transform_1(%arg0: i32) -> (i32, i32) {
    %c0_i32 = arith.constant 0 : i32
    %c0_i32_0 = arith.constant 0 : i32
    %c0_i32_1 = arith.constant 0 : i32
    return %c0_i32, %c0_i32_0 : i32, i32
  }
  func.func @transform_2(%arg0: i32) -> (i32, i32) {
    %c0_i32 = arith.constant 0 : i32
    %c0_i32_0 = arith.constant 0 : i32
    %c0_i32_1 = arith.constant 0 : i32
    return %c0_i32, %c0_i32_0 : i32, i32
  }
  func.func @transform_3(%arg0: i32) -> (i32, i32, i32, i32) {
    %c0_i32 = arith.constant 0 : i32
    %c0_i32_0 = arith.constant 0 : i32
    %c0_i32_1 = arith.constant 0 : i32
    %c0_i32_2 = arith.constant 0 : i32
    return %arg0, %c0_i32, %c0_i32_0, %c0_i32_1 : i32, i32, i32, i32
  }
}

</mosaic_0001>

<llo_original>
// kernel: tpu_custom_call.1
$region0: #{tpu_custom_call.1}
  #allocation0 [shape = 'u32[]', space=smem, size = 0x4, offset = 0x4, fixed_abs, tag = 'smem constant byte address 0x4 - core index']
  #allocation1 [shape = 'u32[144,128]{1,0:T(1,128)}', space=vmem, size = 0x12000, scoped, tag = 'internal scratch']
  #allocation2 [shape = 'bf16[18,18,8]{2,1,0:T(8,128)(2,1)}', space=vmem, size = 0x1b000, scoped, tag = 'scratch operand']
  #allocation3 [shape = 'f32[16,16,64]{2,1,0:T(8,128)}', space=vmem, size = 0x20000, scoped, tag = 'scratch operand']
  %s0 = inlined_call_operand.vmem [shape: bf16[2,16,16,8], index: 0, kind: input, shape index: {}]
  %s1 = inlined_call_operand.vmem [shape: bf16[72,64], index: 1, kind: input, shape index: {}]
  %s2 = inlined_call_operand.vmem [shape: f32[1,64], index: 2, kind: input, shape index: {}]
  %s3 = inlined_call_operand.hbm [shape: bf16[2,8,8,64], index: 3, kind: output, shape index: {}]
  %s4 = sld [smem:[#allocation0]]
  $region45: #{tpu_custom_call.1} parent=0
    _
  %s6 = ssub.s32 1, %s4
  %s7 = scalar_select 0, %s6, %s4
  $region1: #{tpu_custom_call.1} parent=0
    #allocation4 [shape = 'u8[32768]{0}', space=vmem, size = 0x8000, scoped, tag = 'output window, operand 0']
    #allocation5 [shape = 's32[2]{0}', space=sflag, size = 0x8, scoped, tag = 'scoped memory for tpu_custom_call.1']
    %8 = vsyncpa [#allocation5], 0
    %s9 = scalar_lea.sflag [#allocation5], 1
    %10 = vsyncpa %s9, 0
    loop: start=0, step=1, limit=4
    $region2: #{tpu_custom_call.1} parent=1 // loop_pre_header
      _
    $region3: #{tpu_custom_call.1} parent=1 // loop_header
      %s12 = sphi 0, %s16
      %p13 = scmp.ge.s32.totalorder %s12, 4
      %s22 = sphi 0, %s24
      %s25 = sphi 0, %s22
      %s26 = sphi 0, %s25
      %s42 = sphi 0, %s26
      %s46 = sphi 0, %s46
      %s48 = sphi 0, %s46
      %s49 = sphi 0, %s48
      %s63 = sphi 0, %s49
      %s67 = sphi 0, %s67
      %s69 = sphi 0, %s67
      %s70 = sphi 0, %s69
      %s84 = sphi 0, %s70
      %s90 = sphi 0, %s92
      %s93 = sphi 0, %s90
      %s94 = sphi 0, %s93
      %s110 = sphi 0, %s94
    $region4: #{tpu_custom_call.1} parent=1 // loop_header_branch
      %15 = sbr.rel (%p13) target = $region8
    $region5: #{tpu_custom_call.1} parent=1 // loop_body
      %s17 = ssub.s32 %s12, 1
      %s18 = ssub.s32 %s12, 2
      %s19 = sadd.s32 %s12, 1
      %s20 = ssub.s32 %s12, %s19
      %p21 = scmp.eq.s32.totalorder %s20, 0
      %s23 = sadd.s32 %s22, 1
      %s24 = scalar_select %p21, %s22, %s23
      %p27 = pneg %p21
      %p28 = scmp.eq.s32.totalorder %s12, 1
      %p29 = por %p27, %p28
      %p30 = scmp.ne.s32.totalorder %s22, %s25
      %p31 = scmp.eq.s32.totalorder %s12, 0
      %p32 = por %p30, %p31
      %p33 = scmp.ne.s32.totalorder %s22, %s25
      %p34 = scmp.eq.s32.totalorder %s17, 1
      %p35 = por %p33, %p34
      %p36 = scmp.ne.s32.totalorder %s25, %s26
      %p37 = scmp.eq.s32.totalorder %s17, 0
      %p38 = por %p36, %p37
      %p39 = scmp.ne.s32.totalorder %s25, %s26
      %p40 = scmp.eq.s32.totalorder %s18, 1
      %p41 = por %p39, %p40
      %p43 = scmp.ne.s32.totalorder %s26, %s42
      %p44 = scmp.eq.s32.totalorder %s18, 0
      %p45 = por %p43, %p44
      %s47 = sadd.s32 %s46, 1
      %p50 = scmp.eq.s32.totalorder %s12, 1
      %p51 = scmp.ne.s32.totalorder %s46, %s48
      %p52 = scmp.eq.s32.totalorder %s12, 0
      %p53 = por %p51, %p52
      %p54 = scmp.ne.s32.totalorder %s46, %s48
      %p55 = scmp.eq.s32.totalorder %s17, 1
      %p56 = por %p54, %p55
      %p57 = scmp.ne.s32.totalorder %s48, %s49
      %p58 = scmp.eq.s32.totalorder %s17, 0
      %p59 = por %p57, %p58
      %p60 = scmp.ne.s32.totalorder %s48, %s49
      %p61 = scmp.eq.s32.totalorder %s18, 1
      %p62 = por %p60, %p61
      %p64 = scmp.ne.s32.totalorder %s49, %s63
      %p65 = scmp.eq.s32.totalorder %s18, 0
      %p66 = por %p64, %p65
      %s68 = sadd.s32 %s67, 1
      %p71 = scmp.eq.s32.totalorder %s12, 1
      %p72 = scmp.ne.s32.totalorder %s67, %s69
      %p73 = scmp.eq.s32.totalorder %s12, 0
      %p74 = por %p72, %p73
      %p75 = scmp.ne.s32.totalorder %s67, %s69
      %p76 = scmp.eq.s32.totalorder %s17, 1
      %p77 = por %p75, %p76
      %p78 = scmp.ne.s32.totalorder %s69, %s70
      %p79 = scmp.eq.s32.totalorder %s17, 0
      %p80 = por %p78, %p79
      %p81 = scmp.ne.s32.totalorder %s69, %s70
      %p82 = scmp.eq.s32.totalorder %s18, 1
      %p83 = por %p81, %p82
      %p85 = scmp.ne.s32.totalorder %s70, %s84
      %p86 = scmp.eq.s32.totalorder %s18, 0
      %p87 = por %p85, %p86
      %s88 = ssub.s32 %s12, %s19
      %p89 = scmp.eq.s32.totalorder %s88, 0
      %s91 = sadd.s32 %s90, 1
      %s92 = scalar_select %p89, %s90, %s91
      %p95 = pneg %p89
      %p96 = scmp.eq.s32.totalorder %s12, 1
      %p97 = por %p95, %p96
      %p98 = scmp.ne.s32.totalorder %s90, %s93
      %p99 = scmp.eq.s32.totalorder %s12, 0
      %p100 = por %p98, %p99
      %p101 = scmp.ne.s32.totalorder %s90, %s93
      %p102 = scmp.eq.s32.totalorder %s17, 1
      %p103 = por %p101, %p102
      %p104 = scmp.ne.s32.totalorder %s93, %s94
      %p105 = scmp.eq.s32.totalorder %s17, 0
      %p106 = por %p104, %p105
      %p107 = scmp.ne.s32.totalorder %s93, %s94
      %p108 = scmp.eq.s32.totalorder %s18, 1
      %p109 = por %p107, %p108
      %p111 = scmp.ne.s32.totalorder %s94, %s110
      %p112 = scmp.eq.s32.totalorder %s18, 0
      %p113 = por %p111, %p112
      %p114 = scmp.le.s32.totalorder 1, %s12
      %p115 = scmp.lt.s32.totalorder %s12, 3
      %p116 = pnand %p114, %p115
      %p117 = pneg %p116
      // Predicated region
      $region9: #{tpu_custom_call.1} parent=5 // pred_check
        _
      $region10: #{tpu_custom_call.1} parent=5 // pred_check_branch
        %119 = sbr.rel (%p116) target = $region12
      $region11: #{tpu_custom_call.1} parent=5 // pred_region
        %s120 = ssub.s32 %s12, 1
        // Predicated region
        $region13: #{tpu_custom_call.1} parent=11 // pred_check
          %p121 = pneg %p59
        $region14: #{tpu_custom_call.1} parent=11 // pred_check_branch
          %123 = sbr.rel (%p121) target = $region16
        $region15: #{tpu_custom_call.1} parent=11 // pred_region
          _
        $region16: #{tpu_custom_call.1} parent=11 // pred_fallthru
          _
        // Predicated region
        $region17: #{tpu_custom_call.1} parent=11 // pred_check
          %p124 = pneg %p80
        $region18: #{tpu_custom_call.1} parent=11 // pred_check_branch
          %126 = sbr.rel (%p124) target = $region20
        $region19: #{tpu_custom_call.1} parent=11 // pred_region
          _
        $region20: #{tpu_custom_call.1} parent=11 // pred_fallthru
          _
      $region12: #{tpu_custom_call.1} parent=5 // pred_fallthru
        _
      %p127 = scmp.lt.s32.totalorder %s12, 2
      // Predicated region
      $region21: #{tpu_custom_call.1} parent=5 // pred_check
        %p128 = pneg %p127
      $region22: #{tpu_custom_call.1} parent=5 // pred_check_branch
        %130 = sbr.rel (%p128) target = $region24
      $region23: #{tpu_custom_call.1} parent=5 // pred_region
        // Predicated region
        $region25: #{tpu_custom_call.1} parent=23 // pred_check
          %p131 = pneg %p32
        $region26: #{tpu_custom_call.1} parent=23 // pred_check_branch
          %133 = sbr.rel (%p131) target = $region28
        $region27: #{tpu_custom_call.1} parent=23 // pred_region
          %p134 = scmp.lt.s32.totalorder %s12, 1
          %s135 = scalar_select %p134, %s12, 1
          %s136 = smul.addr %s135, 32
          %s137 = smul.addr %s136, 4
          %s138 = scalar_lea.vmem %s0, %s137
        $region28: #{tpu_custom_call.1} parent=23 // pred_fallthru
          _
      $region24: #{tpu_custom_call.1} parent=5 // pred_fallthru
        _
      %p139 = scmp.le.s32.totalorder 1, %s12
      %p140 = scmp.lt.s32.totalorder %s12, 3
      %p141 = pnand %p139, %p140
      %p142 = pneg %p141
      // Predicated region
      $region29: #{tpu_custom_call.1} parent=5 // pred_check
        _
      $region30: #{tpu_custom_call.1} parent=5 // pred_check_branch
        %144 = sbr.rel (%p141) target = $region32
      $region31: #{tpu_custom_call.1} parent=5 // pred_region
        %s145 = ssub.s32 %s12, 1
        %p146 = scmp.lt.s32.totalorder %s17, 1
        %s147 = scalar_select %p146, %s17, 1
        %s148 = smul.addr %s147, 32
        %s149 = smul.addr %s148, 4
        %s150 = scalar_lea.vmem %s0, %s149
        %p151 = pneg %p38
        %p152 = pneg %p35
        %p153 = pneg %p59
        %p154 = pneg %p56
        %p155 = pneg %p80
        %p156 = pneg %p77
        %p157 = pneg %p106
        %p158 = pneg %p103
        %s159 = sand.u32 %s93, 1
        %s160 = scalar_lea.sflag [#allocation5], %s159
        %s161 = sand.u32 %s93, 1
        %s162 = smul.addr %s161, 32
        %s163 = scalar_lea.vmem [#allocation4], %s162
        %p164 = scmp.lt.s32.totalorder %s17, 1
        %s165 = scalar_select %p164, %s17, 1
        %s166 = smul.addr %s165, 32
        %s167 = smul.addr %s166, 4
        %s168 = scalar_lea.vmem %s0, %s167
        %vm170 = vcmask 60416
        %171 = vst.msk [vmem:[#allocation2] sm:$0xf] %vm170, 0
        %172 = vst.msk [vmem:[#allocation2 + $0x4] sm:$0xf] %vm170, 0
        %vm173 = vcmask 57344
        %174 = vst.msk [vmem:[#allocation2 + $0x8] sm:$0x1] %vm173, 0
        %175 = vst.msk [vmem:[#allocation2 + $0xc] sm:$0xf] %vm170, 0
        %176 = vst.msk [vmem:[#allocation2 + $0x10] sm:$0xf] %vm170, 0
        %177 = vst.msk [vmem:[#allocation2 + $0x14] sm:$0x1] %vm173, 0
        %178 = vst.msk [vmem:[#allocation2 + $0x18] sm:$0xf] %vm170, 0
        %179 = vst.msk [vmem:[#allocation2 + $0x1c] sm:$0xf] %vm170, 0
        %180 = vst.msk [vmem:[#allocation2 + $0x20] sm:$0x1] %vm173, 0
        %181 = vst.msk [vmem:[#allocation2 + $0x24] sm:$0xf] %vm170, 0
        %182 = vst.msk [vmem:[#allocation2 + $0x28] sm:$0xf] %vm170, 0
        %183 = vst.msk [vmem:[#allocation2 + $0x2c] sm:$0x1] %vm173, 0
        %184 = vst.msk [vmem:[#allocation2 + $0x30] sm:$0xf] %vm170, 0
        %185 = vst.msk [vmem:[#allocation2 + $0x34] sm:$0xf] %vm170, 0
        %186 = vst.msk [vmem:[#allocation2 + $0x38] sm:$0x1] %vm173, 0
        %187 = vst.msk [vmem:[#allocation2 + $0x3c] sm:$0xf] %vm170, 0
        %188 = vst.msk [vmem:[#allocation2 + $0x40] sm:$0xf] %vm170, 0
        %189 = vst.msk [vmem:[#allocation2 + $0x44] sm:$0x1] %vm173, 0
        %190 = vst.msk [vmem:[#allocation2 + $0x48] sm:$0xf] %vm170, 0
        %191 = vst.msk [vmem:[#allocation2 + $0x4c] sm:$0xf] %vm170, 0
        %192 = vst.msk [vmem:[#allocation2 + $0x50] sm:$0x1] %vm173, 0
        %193 = vst.msk [vmem:[#allocation2 + $0x54] sm:$0xf] %vm170, 0
        %194 = vst.msk [vmem:[#allocation2 + $0x58] sm:$0xf] %vm170, 0
        %195 = vst.msk [vmem:[#allocation2 + $0x5c] sm:$0x1] %vm173, 0
        %196 = vst.msk [vmem:[#allocation2 + $0x60] sm:$0xf] %vm170, 0
        %197 = vst.msk [vmem:[#allocation2 + $0x64] sm:$0xf] %vm170, 0
        %198 = vst.msk [vmem:[#allocation2 + $0x68] sm:$0x1] %vm173, 0
        %199 = vst.msk [vmem:[#allocation2 + $0x6c] sm:$0xf] %vm170, 0
        %200 = vst.msk [vmem:[#allocation2 + $0x70] sm:$0xf] %vm170, 0
        %201 = vst.msk [vmem:[#allocation2 + $0x74] sm:$0x1] %vm173, 0
        %202 = vst.msk [vmem:[#allocation2 + $0x78] sm:$0xf] %vm170, 0
        %203 = vst.msk [vmem:[#allocation2 + $0x7c] sm:$0xf] %vm170, 0
        %204 = vst.msk [vmem:[#allocation2 + $0x80] sm:$0x1] %vm173, 0
        %205 = vst.msk [vmem:[#allocation2 + $0x84] sm:$0xf] %vm170, 0
        %206 = vst.msk [vmem:[#allocation2 + $0x88] sm:$0xf] %vm170, 0
        %207 = vst.msk [vmem:[#allocation2 + $0x8c] sm:$0x1] %vm173, 0
        %208 = vst.msk [vmem:[#allocation2 + $0x90] sm:$0xf] %vm170, 0
        %209 = vst.msk [vmem:[#allocation2 + $0x94] sm:$0xf] %vm170, 0
        %210 = vst.msk [vmem:[#allocation2 + $0x98] sm:$0x1] %vm173, 0
        %211 = vst.msk [vmem:[#allocation2 + $0x9c] sm:$0xf] %vm170, 0
        %212 = vst.msk [vmem:[#allocation2 + $0xa0] sm:$0xf] %vm170, 0
        %213 = vst.msk [vmem:[#allocation2 + $0xa4] sm:$0x1] %vm173, 0
        %214 = vst.msk [vmem:[#allocation2 + $0xa8] sm:$0xf] %vm170, 0
        %215 = vst.msk [vmem:[#allocation2 + $0xac] sm:$0xf] %vm170, 0
        %216 = vst.msk [vmem:[#allocation2 + $0xb0] sm:$0x1] %vm173, 0
        %217 = vst.msk [vmem:[#allocation2 + $0xb4] sm:$0xf] %vm170, 0
        %218 = vst.msk [vmem:[#allocation2 + $0xb8] sm:$0xf] %vm170, 0
        %219 = vst.msk [vmem:[#allocation2 + $0xbc] sm:$0x1] %vm173, 0
        %220 = vst.msk [vmem:[#allocation2 + $0xc0] sm:$0xf] %vm170, 0
        %221 = vst.msk [vmem:[#allocation2 + $0xc4] sm:$0xf] %vm170, 0
        %222 = vst.msk [vmem:[#allocation2 + $0xc8] sm:$0x1] %vm173, 0
        %223 = vst.msk [vmem:[#allocation2 + $0xcc] sm:$0xf] %vm170, 0
        %224 = vst.msk [vmem:[#allocation2 + $0xd0] sm:$0xf] %vm170, 0
        %225 = vst.msk [vmem:[#allocation2 + $0xd4] sm:$0x1] %vm173, 0
        %v226 = vld [vmem:[%s168] sm:$0xf]
        %v227 = vld [vmem:[%s168 + $0x4] sm:$0xf]
        %v228 = vld [vmem:[%s168 + $0x8] sm:$0xf]
        %v229 = vld [vmem:[%s168 + $0xc] sm:$0xf]
        %v230 = vld [vmem:[%s168 + $0x10] sm:$0xf]
        %v231 = vld [vmem:[%s168 + $0x14] sm:$0xf]
        %v232 = vld [vmem:[%s168 + $0x18] sm:$0xf]
        %v233 = vld [vmem:[%s168 + $0x1c] sm:$0xf]
        %v234 = vld [vmem:[%s168 + $0x20] sm:$0xf]
        %v235 = vld [vmem:[%s168 + $0x24] sm:$0xf]
        %v236 = vld [vmem:[%s168 + $0x28] sm:$0xf]
        %v237 = vld [vmem:[%s168 + $0x2c] sm:$0xf]
        %v238 = vld [vmem:[%s168 + $0x30] sm:$0xf]
        %v239 = vld [vmem:[%s168 + $0x34] sm:$0xf]
        %v240 = vld [vmem:[%s168 + $0x38] sm:$0xf]
        %v241 = vld [vmem:[%s168 + $0x3c] sm:$0xf]
        %v242 = vld [vmem:[%s168 + $0x40] sm:$0xf]
        %v243 = vld [vmem:[%s168 + $0x44] sm:$0xf]
        %v244 = vld [vmem:[%s168 + $0x48] sm:$0xf]
        %v245 = vld [vmem:[%s168 + $0x4c] sm:$0xf]
        %v246 = vld [vmem:[%s168 + $0x50] sm:$0xf]
        %v247 = vld [vmem:[%s168 + $0x54] sm:$0xf]
        %v248 = vld [vmem:[%s168 + $0x58] sm:$0xf]
        %v249 = vld [vmem:[%s168 + $0x5c] sm:$0xf]
        %v250 = vld [vmem:[%s168 + $0x60] sm:$0xf]
        %v251 = vld [vmem:[%s168 + $0x64] sm:$0xf]
        %v252 = vld [vmem:[%s168 + $0x68] sm:$0xf]
        %v253 = vld [vmem:[%s168 + $0x6c] sm:$0xf]
        %v254 = vld [vmem:[%s168 + $0x70] sm:$0xf]
        %v255 = vld [vmem:[%s168 + $0x74] sm:$0xf]
        %v256 = vld [vmem:[%s168 + $0x78] sm:$0xf]
        %v257 = vld [vmem:[%s168 + $0x7c] sm:$0xf]
        %vm258 = vsmask.f32 256
        %vm259 = vsmask.f32 4368
        %vm260 = vmor %vm258, %vm259
        %v262 = vshrl.u32 %v226, 16
        %v264 = vrot.slane %v262, 7
        %v265 = vshll.u32 %v226, 16
        %v267 = vor.u32 %v264, %v265
        %v268 = vrot.slane %v264, 4
        %v270 = vshrl.u32 %v227, 16
        %v272 = vrot.slane %v270, 7
        %v273 = vshll.u32 %v227, 16
        %v275 = vor.u32 %v272, %v273
        %v276 = vsel %vm260, %v268, %v275
        %v277 = vrot.slane %v272, 4
        %v279 = vshrl.u32 %v228, 16
        %v281 = vrot.slane %v279, 7
        %v282 = vshll.u32 %v228, 16
        %v284 = vor.u32 %v281, %v282
        %v285 = vrot.slane %v281, 4
        %v287 = vshrl.u32 %v229, 16
        %v289 = vrot.slane %v287, 7
        %v290 = vshll.u32 %v229, 16
        %v292 = vor.u32 %v289, %v290
        %v293 = vsel %vm260, %v285, %v292
        %v294 = vrot.slane %v289, 4
        %v296 = vshrl.u32 %v230, 16
        %v298 = vrot.slane %v296, 7
        %v299 = vshll.u32 %v230, 16
        %v301 = vor.u32 %v298, %v299
        %v302 = vrot.slane %v298, 4
        %v304 = vshrl.u32 %v231, 16
        %v306 = vrot.slane %v304, 7
        %v307 = vshll.u32 %v231, 16
        %v309 = vor.u32 %v306, %v307
        %v310 = vsel %vm260, %v302, %v309
        %v311 = vrot.slane %v306, 4
        %v313 = vshrl.u32 %v232, 16
        %v315 = vrot.slane %v313, 7
        %v316 = vshll.u32 %v232, 16
        %v318 = vor.u32 %v315, %v316
        %v319 = vrot.slane %v315, 4
        %v321 = vshrl.u32 %v233, 16
        %v323 = vrot.slane %v321, 7
        %v324 = vshll.u32 %v233, 16
        %v326 = vor.u32 %v323, %v324
        %v327 = vsel %vm260, %v319, %v326
        %v328 = vrot.slane %v323, 4
        %v330 = vshrl.u32 %v234, 16
        %v332 = vrot.slane %v330, 7
        %v333 = vshll.u32 %v234, 16
        %v335 = vor.u32 %v332, %v333
        %v336 = vrot.slane %v332, 4
        %v338 = vshrl.u32 %v235, 16
        %v340 = vrot.slane %v338, 7
        %v341 = vshll.u32 %v235, 16
        %v343 = vor.u32 %v340, %v341
        %v344 = vsel %vm260, %v336, %v343
        %v345 = vrot.slane %v340, 4
        %v347 = vshrl.u32 %v236, 16
        %v349 = vrot.slane %v347, 7
        %v350 = vshll.u32 %v236, 16
        %v352 = vor.u32 %v349, %v350
        %v353 = vrot.slane %v349, 4
        %v355 = vshrl.u32 %v237, 16
        %v357 = vrot.slane %v355, 7
        %v358 = vshll.u32 %v237, 16
        %v360 = vor.u32 %v357, %v358
        %v361 = vsel %vm260, %v353, %v360
        %v362 = vrot.slane %v357, 4
        %v364 = vshrl.u32 %v238, 16
        %v366 = vrot.slane %v364, 7
        %v367 = vshll.u32 %v238, 16
        %v369 = vor.u32 %v366, %v367
        %v370 = vrot.slane %v366, 4
        %v372 = vshrl.u32 %v239, 16
        %v374 = vrot.slane %v372, 7
        %v375 = vshll.u32 %v239, 16
        %v377 = vor.u32 %v374, %v375
        %v378 = vsel %vm260, %v370, %v377
        %v379 = vrot.slane %v374, 4
        %v381 = vshrl.u32 %v240, 16
        %v383 = vrot.slane %v381, 7
        %v384 = vshll.u32 %v240, 16
        %v386 = vor.u32 %v383, %v384
        %v387 = vrot.slane %v383, 4
        %v389 = vshrl.u32 %v241, 16
        %v391 = vrot.slane %v389, 7
        %v392 = vshll.u32 %v241, 16
        %v394 = vor.u32 %v391, %v392
        %v395 = vsel %vm260, %v387, %v394
        %v396 = vrot.slane %v391, 4
        %v398 = vshrl.u32 %v242, 16
        %v400 = vrot.slane %v398, 7
        %v401 = vshll.u32 %v242, 16
        %v403 = vor.u32 %v400, %v401
        %v404 = vrot.slane %v400, 4
        %v406 = vshrl.u32 %v243, 16
        %v408 = vrot.slane %v406, 7
        %v409 = vshll.u32 %v243, 16
        %v411 = vor.u32 %v408, %v409
        %v412 = vsel %vm260, %v404, %v411
        %v413 = vrot.slane %v408, 4
        %v415 = vshrl.u32 %v244, 16
        %v417 = vrot.slane %v415, 7
        %v418 = vshll.u32 %v244, 16
        %v420 = vor.u32 %v417, %v418
        %v421 = vrot.slane %v417, 4
        %v423 = vshrl.u32 %v245, 16
        %v425 = vrot.slane %v423, 7
        %v426 = vshll.u32 %v245, 16
        %v428 = vor.u32 %v425, %v426
        %v429 = vsel %vm260, %v421, %v428
        %v430 = vrot.slane %v425, 4
        %v432 = vshrl.u32 %v246, 16
        %v434 = vrot.slane %v432, 7
        %v435 = vshll.u32 %v246, 16
        %v437 = vor.u32 %v434, %v435
        %v438 = vrot.slane %v434, 4
        %v440 = vshrl.u32 %v247, 16
        %v442 = vrot.slane %v440, 7
        %v443 = vshll.u32 %v247, 16
        %v445 = vor.u32 %v442, %v443
        %v446 = vsel %vm260, %v438, %v445
        %v447 = vrot.slane %v442, 4
        %v449 = vshrl.u32 %v248, 16
        %v451 = vrot.slane %v449, 7
        %v452 = vshll.u32 %v248, 16
        %v454 = vor.u32 %v451, %v452
        %v455 = vrot.slane %v451, 4
        %v457 = vshrl.u32 %v249, 16
        %v459 = vrot.slane %v457, 7
        %v460 = vshll.u32 %v249, 16
        %v462 = vor.u32 %v459, %v460
        %v463 = vsel %vm260, %v455, %v462
        %v464 = vrot.slane %v459, 4
        %v466 = vshrl.u32 %v250, 16
        %v468 = vrot.slane %v466, 7
        %v469 = vshll.u32 %v250, 16
        %v471 = vor.u32 %v468, %v469
        %v472 = vrot.slane %v468, 4
        %v474 = vshrl.u32 %v251, 16
        %v476 = vrot.slane %v474, 7
        %v477 = vshll.u32 %v251, 16
        %v479 = vor.u32 %v476, %v477
        %v480 = vsel %vm260, %v472, %v479
        %v481 = vrot.slane %v476, 4
        %v483 = vshrl.u32 %v252, 16
        %v485 = vrot.slane %v483, 7
        %v486 = vshll.u32 %v252, 16
        %v488 = vor.u32 %v485, %v486
        %v489 = vrot.slane %v485, 4
        %v491 = vshrl.u32 %v253, 16
        %v493 = vrot.slane %v491, 7
        %v494 = vshll.u32 %v253, 16
        %v496 = vor.u32 %v493, %v494
        %v497 = vsel %vm260, %v489, %v496
        %v498 = vrot.slane %v493, 4
        %v500 = vshrl.u32 %v254, 16
        %v502 = vrot.slane %v500, 7
        %v503 = vshll.u32 %v254, 16
        %v505 = vor.u32 %v502, %v503
        %v506 = vrot.slane %v502, 4
        %v508 = vshrl.u32 %v255, 16
        %v510 = vrot.slane %v508, 7
        %v511 = vshll.u32 %v255, 16
        %v513 = vor.u32 %v510, %v511
        %v514 = vsel %vm260, %v506, %v513
        %v515 = vrot.slane %v510, 4
        %v517 = vshrl.u32 %v256, 16
        %v519 = vrot.slane %v517, 7
        %v520 = vshll.u32 %v256, 16
        %v522 = vor.u32 %v519, %v520
        %v523 = vrot.slane %v519, 4
        %v525 = vshrl.u32 %v257, 16
        %v527 = vrot.slane %v525, 7
        %v528 = vshll.u32 %v257, 16
        %v530 = vor.u32 %v527, %v528
        %v531 = vsel %vm260, %v523, %v530
        %v532 = vrot.slane %v527, 4
        %s581 = scalar_lea.vmem [#allocation2], 12
        %vm582 = vcmask 60416
        %vm583 = vsmask.f32 7938
        %vm584 = vmand %vm582, %vm583
        %v585 = vld [vmem:[%s581] sm:$0xf]
        %v586 = vsel %vm584, %v267, %v585
        %587 = vst [vmem:[%s581] sm:$0xf] %v586
        %588 = vst.msk [vmem:[%s581 + $0x4] sm:$0xf] %vm170, %v276
        %vm589 = vcmask 57344
        %vm590 = vmand %vm589, %vm258
        %v591 = vld [vmem:[%s581 + $0x8] sm:$0x1]
        %v592 = vsel %vm590, %v277, %v591
        %593 = vst [vmem:[%s581 + $0x8] sm:$0x1] %v592
        %v594 = vld [vmem:[%s581 + $0xc] sm:$0xf]
        %v595 = vsel %vm584, %v284, %v594
        %596 = vst [vmem:[%s581 + $0xc] sm:$0xf] %v595
        %597 = vst.msk [vmem:[%s581 + $0x10] sm:$0xf] %vm170, %v293
        %v598 = vld [vmem:[%s581 + $0x14] sm:$0x1]
        %v599 = vsel %vm590, %v294, %v598
        %600 = vst [vmem:[%s581 + $0x14] sm:$0x1] %v599
        %v601 = vld [vmem:[%s581 + $0x18] sm:$0xf]
        %v602 = vsel %vm584, %v301, %v601
        %603 = vst [vmem:[%s581 + $0x18] sm:$0xf] %v602
        %604 = vst.msk [vmem:[%s581 + $0x1c] sm:$0xf] %vm170, %v310
        %v605 = vld [vmem:[%s581 + $0x20] sm:$0x1]
        %v606 = vsel %vm590, %v311, %v605
        %607 = vst [vmem:[%s581 + $0x20] sm:$0x1] %v606
        %v608 = vld [vmem:[%s581 + $0x24] sm:$0xf]
        %v609 = vsel %vm584, %v318, %v608
        %610 = vst [vmem:[%s581 + $0x24] sm:$0xf] %v609
        %611 = vst.msk [vmem:[%s581 + $0x28] sm:$0xf] %vm170, %v327
        %v612 = vld [vmem:[%s581 + $0x2c] sm:$0x1]
        %v613 = vsel %vm590, %v328, %v612
        %614 = vst [vmem:[%s581 + $0x2c] sm:$0x1] %v613
        %v615 = vld [vmem:[%s581 + $0x30] sm:$0xf]
        %v616 = vsel %vm584, %v335, %v615
        %617 = vst [vmem:[%s581 + $0x30] sm:$0xf] %v616
        %618 = vst.msk [vmem:[%s581 + $0x34] sm:$0xf] %vm170, %v344
        %v619 = vld [vmem:[%s581 + $0x38] sm:$0x1]
        %v620 = vsel %vm590, %v345, %v619
        %621 = vst [vmem:[%s581 + $0x38] sm:$0x1] %v620
        %v622 = vld [vmem:[%s581 + $0x3c] sm:$0xf]
        %v623 = vsel %vm584, %v352, %v622
        %624 = vst [vmem:[%s581 + $0x3c] sm:$0xf] %v623
        %625 = vst.msk [vmem:[%s581 + $0x40] sm:$0xf] %vm170, %v361
        %v626 = vld [vmem:[%s581 + $0x44] sm:$0x1]
        %v627 = vsel %vm590, %v362, %v626
        %628 = vst [vmem:[%s581 + $0x44] sm:$0x1] %v627
        %v629 = vld [vmem:[%s581 + $0x48] sm:$0xf]
        %v630 = vsel %vm584, %v369, %v629
        %631 = vst [vmem:[%s581 + $0x48] sm:$0xf] %v630
        %632 = vst.msk [vmem:[%s581 + $0x4c] sm:$0xf] %vm170, %v378
        %v633 = vld [vmem:[%s581 + $0x50] sm:$0x1]
        %v634 = vsel %vm590, %v379, %v633
        %635 = vst [vmem:[%s581 + $0x50] sm:$0x1] %v634
        %v636 = vld [vmem:[%s581 + $0x54] sm:$0xf]
        %v637 = vsel %vm584, %v386, %v636
        %638 = vst [vmem:[%s581 + $0x54] sm:$0xf] %v637
        %639 = vst.msk [vmem:[%s581 + $0x58] sm:$0xf] %vm170, %v395
        %v640 = vld [vmem:[%s581 + $0x5c] sm:$0x1]
        %v641 = vsel %vm590, %v396, %v640
        %642 = vst [vmem:[%s581 + $0x5c] sm:$0x1] %v641
        %v643 = vld [vmem:[%s581 + $0x60] sm:$0xf]
        %v644 = vsel %vm584, %v403, %v643
        %645 = vst [vmem:[%s581 + $0x60] sm:$0xf] %v644
        %646 = vst.msk [vmem:[%s581 + $0x64] sm:$0xf] %vm170, %v412
        %v647 = vld [vmem:[%s581 + $0x68] sm:$0x1]
        %v648 = vsel %vm590, %v413, %v647
        %649 = vst [vmem:[%s581 + $0x68] sm:$0x1] %v648
        %v650 = vld [vmem:[%s581 + $0x6c] sm:$0xf]
        %v651 = vsel %vm584, %v420, %v650
        %652 = vst [vmem:[%s581 + $0x6c] sm:$0xf] %v651
        %653 = vst.msk [vmem:[%s581 + $0x70] sm:$0xf] %vm170, %v429
        %v654 = vld [vmem:[%s581 + $0x74] sm:$0x1]
        %v655 = vsel %vm590, %v430, %v654
        %656 = vst [vmem:[%s581 + $0x74] sm:$0x1] %v655
        %v657 = vld [vmem:[%s581 + $0x78] sm:$0xf]
        %v658 = vsel %vm584, %v437, %v657
        %659 = vst [vmem:[%s581 + $0x78] sm:$0xf] %v658
        %660 = vst.msk [vmem:[%s581 + $0x7c] sm:$0xf] %vm170, %v446
        %v661 = vld [vmem:[%s581 + $0x80] sm:$0x1]
        %v662 = vsel %vm590, %v447, %v661
        %663 = vst [vmem:[%s581 + $0x80] sm:$0x1] %v662
        %v664 = vld [vmem:[%s581 + $0x84] sm:$0xf]
        %v665 = vsel %vm584, %v454, %v664
        %666 = vst [vmem:[%s581 + $0x84] sm:$0xf] %v665
        %667 = vst.msk [vmem:[%s581 + $0x88] sm:$0xf] %vm170, %v463
        %v668 = vld [vmem:[%s581 + $0x8c] sm:$0x1]
        %v669 = vsel %vm590, %v464, %v668
        %670 = vst [vmem:[%s581 + $0x8c] sm:$0x1] %v669
        %v671 = vld [vmem:[%s581 + $0x90] sm:$0xf]
        %v672 = vsel %vm584, %v471, %v671
        %673 = vst [vmem:[%s581 + $0x90] sm:$0xf] %v672
        %674 = vst.msk [vmem:[%s581 + $0x94] sm:$0xf] %vm170, %v480
        %v675 = vld [vmem:[%s581 + $0x98] sm:$0x1]
        %v676 = vsel %vm590, %v481, %v675
        %677 = vst [vmem:[%s581 + $0x98] sm:$0x1] %v676
        %v678 = vld [vmem:[%s581 + $0x9c] sm:$0xf]
        %v679 = vsel %vm584, %v488, %v678
        %680 = vst [vmem:[%s581 + $0x9c] sm:$0xf] %v679
        %681 = vst.msk [vmem:[%s581 + $0xa0] sm:$0xf] %vm170, %v497
        %v682 = vld [vmem:[%s581 + $0xa4] sm:$0x1]
        %v683 = vsel %vm590, %v498, %v682
        %684 = vst [vmem:[%s581 + $0xa4] sm:$0x1] %v683
        %v685 = vld [vmem:[%s581 + $0xa8] sm:$0xf]
        %v686 = vsel %vm584, %v505, %v685
        %687 = vst [vmem:[%s581 + $0xa8] sm:$0xf] %v686
        %688 = vst.msk [vmem:[%s581 + $0xac] sm:$0xf] %vm170, %v514
        %v689 = vld [vmem:[%s581 + $0xb0] sm:$0x1]
        %v690 = vsel %vm590, %v515, %v689
        %691 = vst [vmem:[%s581 + $0xb0] sm:$0x1] %v690
        %v692 = vld [vmem:[%s581 + $0xb4] sm:$0xf]
        %v693 = vsel %vm584, %v522, %v692
        %694 = vst [vmem:[%s581 + $0xb4] sm:$0xf] %v693
        %695 = vst.msk [vmem:[%s581 + $0xb8] sm:$0xf] %vm170, %v531
        %v696 = vld [vmem:[%s581 + $0xbc] sm:$0x1]
        %v697 = vsel %vm590, %v532, %v696
        %698 = vst [vmem:[%s581 + $0xbc] sm:$0x1] %v697
        %v699 = vld [vmem:[#allocation2] sm:$0xf]
        %v700 = vld [vmem:[#allocation2 + $0x4] sm:$0xf]
        %v701 = vld [vmem:[#allocation2 + $0x8] sm:$0x1]
        %v702 = vld [vmem:[#allocation2 + $0xc] sm:$0xf]
        %v703 = vld [vmem:[#allocation2 + $0x10] sm:$0xf]
        %v704 = vld [vmem:[#allocation2 + $0x14] sm:$0x1]
        %v705 = vld [vmem:[#allocation2 + $0x18] sm:$0xf]
        %v706 = vld [vmem:[#allocation2 + $0x1c] sm:$0xf]
        %v707 = vld [vmem:[#allocation2 + $0x20] sm:$0x1]
        %v708 = vld [vmem:[#allocation2 + $0x24] sm:$0xf]
        %v709 = vld [vmem:[#allocation2 + $0x28] sm:$0xf]
        %v710 = vld [vmem:[#allocation2 + $0x2c] sm:$0x1]
        %v711 = vld [vmem:[#allocation2 + $0x30] sm:$0xf]
        %v712 = vld [vmem:[#allocation2 + $0x34] sm:$0xf]
        %v713 = vld [vmem:[#allocation2 + $0x38] sm:$0x1]
        %v714 = vld [vmem:[#allocation2 + $0x3c] sm:$0xf]
        %v715 = vld [vmem:[#allocation2 + $0x40] sm:$0xf]
        %v716 = vld [vmem:[#allocation2 + $0x44] sm:$0x1]
        %v717 = vld [vmem:[#allocation2 + $0x48] sm:$0xf]
        %v718 = vld [vmem:[#allocation2 + $0x4c] sm:$0xf]
        %v719 = vld [vmem:[#allocation2 + $0x50] sm:$0x1]
        %v720 = vld [vmem:[#allocation2 + $0x54] sm:$0xf]
        %v721 = vld [vmem:[#allocation2 + $0x58] sm:$0xf]
        %v722 = vld [vmem:[#allocation2 + $0x5c] sm:$0x1]
        %v723 = vld [vmem:[#allocation2 + $0x60] sm:$0xf]
        %v724 = vld [vmem:[#allocation2 + $0x64] sm:$0xf]
        %v725 = vld [vmem:[#allocation2 + $0x68] sm:$0x1]
        %v726 = vld [vmem:[#allocation2 + $0x6c] sm:$0xf]
        %v727 = vld [vmem:[#allocation2 + $0x70] sm:$0xf]
        %v728 = vld [vmem:[#allocation2 + $0x74] sm:$0x1]
        %v729 = vld [vmem:[#allocation2 + $0x78] sm:$0xf]
        %v730 = vld [vmem:[#allocation2 + $0x7c] sm:$0xf]
        %v731 = vld [vmem:[#allocation2 + $0x80] sm:$0x1]
        %v732 = vld [vmem:[#allocation2 + $0x84] sm:$0xf]
        %v733 = vld [vmem:[#allocation2 + $0x88] sm:$0xf]
        %v734 = vld [vmem:[#allocation2 + $0x8c] sm:$0x1]
        %v735 = vld [vmem:[#allocation2 + $0x90] sm:$0xf]
        %v736 = vld [vmem:[#allocation2 + $0x94] sm:$0xf]
        %v737 = vld [vmem:[#allocation2 + $0x98] sm:$0x1]
        %v738 = vld [vmem:[#allocation2 + $0x9c] sm:$0xf]
        %v739 = vld [vmem:[#allocation2 + $0xa0] sm:$0xf]
        %v740 = vld [vmem:[#allocation2 + $0xa4] sm:$0x1]
        %v741 = vld [vmem:[#allocation2 + $0xa8] sm:$0xf]
        %v742 = vld [vmem:[#allocation2 + $0xac] sm:$0xf]
        %v743 = vld [vmem:[#allocation2 + $0xb0] sm:$0x1]
        %v744 = vld [vmem:[#allocation2 + $0xb4] sm:$0xf]
        %v745 = vld [vmem:[#allocation2 + $0xb8] sm:$0xf]
        %v746 = vld [vmem:[#allocation2 + $0xbc] sm:$0x1]
        %v747 = vld [vmem:[#allocation2 + $0xc0] sm:$0xf]
        %v748 = vld [vmem:[#allocation2 + $0xc4] sm:$0xf]
        %v749 = vld [vmem:[#allocation2 + $0xc8] sm:$0x1]
        %v750 = vld [vmem:[#allocation2 + $0xcc] sm:$0xf]
        %v751 = vld [vmem:[#allocation2 + $0xd0] sm:$0xf]
        %v752 = vld [vmem:[#allocation2 + $0xd4] sm:$0x1]
        %v785 = vunpack.c.l.b16 %v699
        %v786 = vunpack.c.l.b16 %v700
        %v787 = vunpack.c.l.b16 %v702
        %v788 = vunpack.c.l.b16 %v703
        %v789 = vunpack.c.l.b16 %v705
        %v790 = vunpack.c.l.b16 %v706
        %v791 = vunpack.c.l.b16 %v708
        %v792 = vunpack.c.l.b16 %v709
        %v793 = vunpack.c.l.b16 %v711
        %v794 = vunpack.c.l.b16 %v712
        %v795 = vunpack.c.l.b16 %v714
        %v796 = vunpack.c.l.b16 %v715
        %v797 = vunpack.c.l.b16 %v717
        %v798 = vunpack.c.l.b16 %v718
        %v799 = vunpack.c.l.b16 %v720
        %v800 = vunpack.c.l.b16 %v721
        %v801 = vunpack.c.l.b16 %v723
        %v802 = vunpack.c.l.b16 %v724
        %v803 = vunpack.c.l.b16 %v726
        %v804 = vunpack.c.l.b16 %v727
        %v805 = vunpack.c.l.b16 %v729
        %v806 = vunpack.c.l.b16 %v730
        %v807 = vunpack.c.l.b16 %v732
        %v808 = vunpack.c.l.b16 %v733
        %v809 = vunpack.c.l.b16 %v735
        %v810 = vunpack.c.l.b16 %v736
        %v811 = vunpack.c.l.b16 %v738
        %v812 = vunpack.c.l.b16 %v739
        %v813 = vunpack.c.l.b16 %v741
        %v814 = vunpack.c.l.b16 %v742
        %v815 = vunpack.c.l.b16 %v744
        %v816 = vunpack.c.l.b16 %v745
        %v817 = vpack.c.b16 %v786, %v785
        %v818 = vpack.c.b16 %v788, %v787
        %v819 = vpack.c.b16 %v790, %v789
        %v820 = vpack.c.b16 %v792, %v791
        %v821 = vpack.c.b16 %v794, %v793
        %v822 = vpack.c.b16 %v796, %v795
        %v823 = vpack.c.b16 %v798, %v797
        %v824 = vpack.c.b16 %v800, %v799
        %v825 = vpack.c.b16 %v802, %v801
        %v826 = vpack.c.b16 %v804, %v803
        %v827 = vpack.c.b16 %v806, %v805
        %v828 = vpack.c.b16 %v808, %v807
        %v829 = vpack.c.b16 %v810, %v809
        %v830 = vpack.c.b16 %v812, %v811
        %v831 = vpack.c.b16 %v814, %v813
        %v832 = vpack.c.b16 %v816, %v815
        %v849 = vunpack.c.l.b16 %v701
        %v850 = vunpack.c.l.b16 %v704
        %v851 = vunpack.c.l.b16 %v707
        %v852 = vunpack.c.l.b16 %v710
        %v853 = vunpack.c.l.b16 %v713
        %v854 = vunpack.c.l.b16 %v716
        %v855 = vunpack.c.l.b16 %v719
        %v856 = vunpack.c.l.b16 %v722
        %v857 = vunpack.c.l.b16 %v725
        %v858 = vunpack.c.l.b16 %v728
        %v859 = vunpack.c.l.b16 %v731
        %v860 = vunpack.c.l.b16 %v734
        %v861 = vunpack.c.l.b16 %v737
        %v862 = vunpack.c.l.b16 %v740
        %v863 = vunpack.c.l.b16 %v743
        %v864 = vunpack.c.l.b16 %v746
        %v865 = vpack.c.b16 %v849, %v849
        %v866 = vpack.c.b16 %v850, %v850
        %v867 = vpack.c.b16 %v851, %v851
        %v868 = vpack.c.b16 %v852, %v852
        %v869 = vpack.c.b16 %v853, %v853
        %v870 = vpack.c.b16 %v854, %v854
        %v871 = vpack.c.b16 %v855, %v855
        %v872 = vpack.c.b16 %v856, %v856
        %v873 = vpack.c.b16 %v857, %v857
        %v874 = vpack.c.b16 %v858, %v858
        %v875 = vpack.c.b16 %v859, %v859
        %v876 = vpack.c.b16 %v860, %v860
        %v877 = vpack.c.b16 %v861, %v861
        %v878 = vpack.c.b16 %v862, %v862
        %v879 = vpack.c.b16 %v863, %v863
        %v880 = vpack.c.b16 %v864, %v864
        %vm881 = vsmask.f32 7424
        %v883 = vshrl.u32 %v817, 16
        %v885 = vshll.u32 %v817, 16
        %v887 = vrot.slane %v885, 1
        %v888 = vor.u32 %v883, %v887
        %v890 = vshll.u32 %v865, 16
        %v892 = vrot.slane %v890, 1
        %v893 = vsel %vm881, %v888, %v892
        %v895 = vshrl.u32 %v818, 16
        %v897 = vshll.u32 %v818, 16
        %v899 = vrot.slane %v897, 1
        %v900 = vor.u32 %v895, %v899
        %v902 = vshll.u32 %v866, 16
        %v904 = vrot.slane %v902, 1
        %v905 = vsel %vm881, %v900, %v904
        %v907 = vshrl.u32 %v819, 16
        %v909 = vshll.u32 %v819, 16
        %v911 = vrot.slane %v909, 1
        %v912 = vor.u32 %v907, %v911
        %v914 = vshll.u32 %v867, 16
        %v916 = vrot.slane %v914, 1
        %v917 = vsel %vm881, %v912, %v916
        %v919 = vshrl.u32 %v820, 16
        %v921 = vshll.u32 %v820, 16
        %v923 = vrot.slane %v921, 1
        %v924 = vor.u32 %v919, %v923
        %v926 = vshll.u32 %v868, 16
        %v928 = vrot.slane %v926, 1
        %v929 = vsel %vm881, %v924, %v928
        %v931 = vshrl.u32 %v821, 16
        %v933 = vshll.u32 %v821, 16
        %v935 = vrot.slane %v933, 1
        %v936 = vor.u32 %v931, %v935
        %v938 = vshll.u32 %v869, 16
        %v940 = vrot.slane %v938, 1
        %v941 = vsel %vm881, %v936, %v940
        %v943 = vshrl.u32 %v822, 16
        %v945 = vshll.u32 %v822, 16
        %v947 = vrot.slane %v945, 1
        %v948 = vor.u32 %v943, %v947
        %v950 = vshll.u32 %v870, 16
        %v952 = vrot.slane %v950, 1
        %v953 = vsel %vm881, %v948, %v952
        %v955 = vshrl.u32 %v823, 16
        %v957 = vshll.u32 %v823, 16
        %v959 = vrot.slane %v957, 1
        %v960 = vor.u32 %v955, %v959
        %v962 = vshll.u32 %v871, 16
        %v964 = vrot.slane %v962, 1
        %v965 = vsel %vm881, %v960, %v964
        %v967 = vshrl.u32 %v824, 16
        %v969 = vshll.u32 %v824, 16
        %v971 = vrot.slane %v969, 1
        %v972 = vor.u32 %v967, %v971
        %v974 = vshll.u32 %v872, 16
        %v976 = vrot.slane %v974, 1
        %v977 = vsel %vm881, %v972, %v976
        %v979 = vshrl.u32 %v825, 16
        %v981 = vshll.u32 %v825, 16
        %v983 = vrot.slane %v981, 1
        %v984 = vor.u32 %v979, %v983
        %v986 = vshll.u32 %v873, 16
        %v988 = vrot.slane %v986, 1
        %v989 = vsel %vm881, %v984, %v988
        %v991 = vshrl.u32 %v826, 16
        %v993 = vshll.u32 %v826, 16
        %v995 = vrot.slane %v993, 1
        %v996 = vor.u32 %v991, %v995
        %v998 = vshll.u32 %v874, 16
        %v1000 = vrot.slane %v998, 1
        %v1001 = vsel %vm881, %v996, %v1000
        %v1003 = vshrl.u32 %v827, 16
        %v1005 = vshll.u32 %v827, 16
        %v1007 = vrot.slane %v1005, 1
        %v1008 = vor.u32 %v1003, %v1007
        %v1010 = vshll.u32 %v875, 16
        %v1012 = vrot.slane %v1010, 1
        %v1013 = vsel %vm881, %v1008, %v1012
        %v1015 = vshrl.u32 %v828, 16
        %v1017 = vshll.u32 %v828, 16
        %v1019 = vrot.slane %v1017, 1
        %v1020 = vor.u32 %v1015, %v1019
        %v1022 = vshll.u32 %v876, 16
        %v1024 = vrot.slane %v1022, 1
        %v1025 = vsel %vm881, %v1020, %v1024
        %v1027 = vshrl.u32 %v829, 16
        %v1029 = vshll.u32 %v829, 16
        %v1031 = vrot.slane %v1029, 1
        %v1032 = vor.u32 %v1027, %v1031
        %v1034 = vshll.u32 %v877, 16
        %v1036 = vrot.slane %v1034, 1
        %v1037 = vsel %vm881, %v1032, %v1036
        %v1039 = vshrl.u32 %v830, 16
        %v1041 = vshll.u32 %v830, 16
        %v1043 = vrot.slane %v1041, 1
        %v1044 = vor.u32 %v1039, %v1043
        %v1046 = vshll.u32 %v878, 16
        %v1048 = vrot.slane %v1046, 1
        %v1049 = vsel %vm881, %v1044, %v1048
        %v1051 = vshrl.u32 %v831, 16
        %v1053 = vshll.u32 %v831, 16
        %v1055 = vrot.slane %v1053, 1
        %v1056 = vor.u32 %v1051, %v1055
        %v1058 = vshll.u32 %v879, 16
        %v1060 = vrot.slane %v1058, 1
        %v1061 = vsel %vm881, %v1056, %v1060
        %v1063 = vshrl.u32 %v832, 16
        %v1065 = vshll.u32 %v832, 16
        %v1067 = vrot.slane %v1065, 1
        %v1068 = vor.u32 %v1063, %v1067
        %v1070 = vshll.u32 %v880, 16
        %v1072 = vrot.slane %v1070, 1
        %v1073 = vsel %vm881, %v1068, %v1072
        %1074 = vrot.lane.b32.xlu0 %v893, 8
        %v1075 = vpop.permute.xlu0 %1074
        %1076 = vrot.lane.b32.xlu0 %v905, 8
        %v1077 = vpop.permute.xlu0 %1076
        %1078 = vrot.lane.b32.xlu0 %v917, 8
        %v1079 = vpop.permute.xlu0 %1078
        %1080 = vrot.lane.b32.xlu0 %v929, 8
        %v1081 = vpop.permute.xlu0 %1080
        %1082 = vrot.lane.b32.xlu0 %v941, 8
        %v1083 = vpop.permute.xlu0 %1082
        %1084 = vrot.lane.b32.xlu0 %v953, 8
        %v1085 = vpop.permute.xlu0 %1084
        %1086 = vrot.lane.b32.xlu0 %v965, 8
        %v1087 = vpop.permute.xlu0 %1086
        %1088 = vrot.lane.b32.xlu0 %v977, 8
        %v1089 = vpop.permute.xlu0 %1088
        %1090 = vrot.lane.b32.xlu0 %v989, 8
        %v1091 = vpop.permute.xlu0 %1090
        %1092 = vrot.lane.b32.xlu0 %v1001, 8
        %v1093 = vpop.permute.xlu0 %1092
        %1094 = vrot.lane.b32.xlu0 %v1013, 8
        %v1095 = vpop.permute.xlu0 %1094
        %1096 = vrot.lane.b32.xlu0 %v1025, 8
        %v1097 = vpop.permute.xlu0 %1096
        %1098 = vrot.lane.b32.xlu0 %v1037, 8
        %v1099 = vpop.permute.xlu0 %1098
        %1100 = vrot.lane.b32.xlu0 %v1049, 8
        %v1101 = vpop.permute.xlu0 %1100
        %1102 = vrot.lane.b32.xlu0 %v1061, 8
        %v1103 = vpop.permute.xlu0 %1102
        %1104 = vrot.lane.b32.xlu0 %v1073, 8
        %v1105 = vpop.permute.xlu0 %1104
        %vm1106 = vcmask 1046528
        %v1107 = vrot.slane %v817, 1
        %v1108 = vrot.slane %v865, 1
        %v1109 = vsel %vm1106, %v1107, %v1108
        %v1110 = vrot.slane %v818, 1
        %v1111 = vrot.slane %v866, 1
        %v1112 = vsel %vm1106, %v1110, %v1111
        %v1113 = vrot.slane %v819, 1
        %v1114 = vrot.slane %v867, 1
        %v1115 = vsel %vm1106, %v1113, %v1114
        %v1116 = vrot.slane %v820, 1
        %v1117 = vrot.slane %v868, 1
        %v1118 = vsel %vm1106, %v1116, %v1117
        %v1119 = vrot.slane %v821, 1
        %v1120 = vrot.slane %v869, 1
        %v1121 = vsel %vm1106, %v1119, %v1120
        %v1122 = vrot.slane %v822, 1
        %v1123 = vrot.slane %v870, 1
        %v1124 = vsel %vm1106, %v1122, %v1123
        %v1125 = vrot.slane %v823, 1
        %v1126 = vrot.slane %v871, 1
        %v1127 = vsel %vm1106, %v1125, %v1126
        %v1128 = vrot.slane %v824, 1
        %v1129 = vrot.slane %v872, 1
        %v1130 = vsel %vm1106, %v1128, %v1129
        %v1131 = vrot.slane %v825, 1
        %v1132 = vrot.slane %v873, 1
        %v1133 = vsel %vm1106, %v1131, %v1132
        %v1134 = vrot.slane %v826, 1
        %v1135 = vrot.slane %v874, 1
        %v1136 = vsel %vm1106, %v1134, %v1135
        %v1137 = vrot.slane %v827, 1
        %v1138 = vrot.slane %v875, 1
        %v1139 = vsel %vm1106, %v1137, %v1138
        %v1140 = vrot.slane %v828, 1
        %v1141 = vrot.slane %v876, 1
        %v1142 = vsel %vm1106, %v1140, %v1141
        %v1143 = vrot.slane %v829, 1
        %v1144 = vrot.slane %v877, 1
        %v1145 = vsel %vm1106, %v1143, %v1144
        %v1146 = vrot.slane %v830, 1
        %v1147 = vrot.slane %v878, 1
        %v1148 = vsel %vm1106, %v1146, %v1147
        %v1149 = vrot.slane %v831, 1
        %v1150 = vrot.slane %v879, 1
        %v1151 = vsel %vm1106, %v1149, %v1150
        %v1152 = vrot.slane %v832, 1
        %v1153 = vrot.slane %v880, 1
        %v1154 = vsel %vm1106, %v1152, %v1153
        %1155 = vrot.lane.b32.xlu0 %v1109, 16
        %v1156 = vpop.permute.xlu0 %1155
        %1157 = vrot.lane.b32.xlu0 %v1112, 16
        %v1158 = vpop.permute.xlu0 %1157
        %1159 = vrot.lane.b32.xlu0 %v1115, 16
        %v1160 = vpop.permute.xlu0 %1159
        %1161 = vrot.lane.b32.xlu0 %v1118, 16
        %v1162 = vpop.permute.xlu0 %1161
        %1163 = vrot.lane.b32.xlu0 %v1121, 16
        %v1164 = vpop.permute.xlu0 %1163
        %1165 = vrot.lane.b32.xlu0 %v1124, 16
        %v1166 = vpop.permute.xlu0 %1165
        %1167 = vrot.lane.b32.xlu0 %v1127, 16
        %v1168 = vpop.permute.xlu0 %1167
        %1169 = vrot.lane.b32.xlu0 %v1130, 16
        %v1170 = vpop.permute.xlu0 %1169
        %1171 = vrot.lane.b32.xlu0 %v1133, 16
        %v1172 = vpop.permute.xlu0 %1171
        %1173 = vrot.lane.b32.xlu0 %v1136, 16
        %v1174 = vpop.permute.xlu0 %1173
        %1175 = vrot.lane.b32.xlu0 %v1139, 16
        %v1176 = vpop.permute.xlu0 %1175
        %1177 = vrot.lane.b32.xlu0 %v1142, 16
        %v1178 = vpop.permute.xlu0 %1177
        %1179 = vrot.lane.b32.xlu0 %v1145, 16
        %v1180 = vpop.permute.xlu0 %1179
        %1181 = vrot.lane.b32.xlu0 %v1148, 16
        %v1182 = vpop.permute.xlu0 %1181
        %1183 = vrot.lane.b32.xlu0 %v1151, 16
        %v1184 = vpop.permute.xlu0 %1183
        %1185 = vrot.lane.b32.xlu0 %v1154, 16
        %v1186 = vpop.permute.xlu0 %1185
        %v1189 = vunpack.c.l.b16 %v747
        %v1190 = vunpack.c.l.b16 %v748
        %v1191 = vpack.c.b16 %v1190, %v1189
        %1192 = vrot.lane.b32.xlu0 %v818, 24
        %v1193 = vpop.permute.xlu0 %1192
        %1194 = vrot.lane.b32.xlu0 %v819, 24
        %v1195 = vpop.permute.xlu0 %1194
        %1196 = vrot.lane.b32.xlu0 %v820, 24
        %v1197 = vpop.permute.xlu0 %1196
        %1198 = vrot.lane.b32.xlu0 %v821, 24
        %v1199 = vpop.permute.xlu0 %1198
        %1200 = vrot.lane.b32.xlu0 %v822, 24
        %v1201 = vpop.permute.xlu0 %1200
        %1202 = vrot.lane.b32.xlu0 %v823, 24
        %v1203 = vpop.permute.xlu0 %1202
        %1204 = vrot.lane.b32.xlu0 %v824, 24
        %v1205 = vpop.permute.xlu0 %1204
        %1206 = vrot.lane.b32.xlu0 %v825, 24
        %v1207 = vpop.permute.xlu0 %1206
        %1208 = vrot.lane.b32.xlu0 %v826, 24
        %v1209 = vpop.permute.xlu0 %1208
        %1210 = vrot.lane.b32.xlu0 %v827, 24
        %v1211 = vpop.permute.xlu0 %1210
        %1212 = vrot.lane.b32.xlu0 %v828, 24
        %v1213 = vpop.permute.xlu0 %1212
        %1214 = vrot.lane.b32.xlu0 %v829, 24
        %v1215 = vpop.permute.xlu0 %1214
        %1216 = vrot.lane.b32.xlu0 %v830, 24
        %v1217 = vpop.permute.xlu0 %1216
        %1218 = vrot.lane.b32.xlu0 %v831, 24
        %v1219 = vpop.permute.xlu0 %1218
        %1220 = vrot.lane.b32.xlu0 %v832, 24
        %v1221 = vpop.permute.xlu0 %1220
        %1222 = vrot.lane.b32.xlu0 %v1191, 24
        %v1223 = vpop.permute.xlu0 %1222
        %v1225 = vunpack.c.l.b16 %v749
        %v1226 = vpack.c.b16 %v1225, %v1225
        %v1228 = vshrl.u32 %v1191, 16
        %v1230 = vshll.u32 %v1191, 16
        %v1232 = vrot.slane %v1230, 1
        %v1233 = vor.u32 %v1228, %v1232
        %v1235 = vshll.u32 %v1226, 16
        %v1237 = vrot.slane %v1235, 1
        %v1238 = vsel %vm881, %v1233, %v1237
        %1239 = vrot.lane.b32.xlu0 %v905, 32
        %v1240 = vpop.permute.xlu0 %1239
        %1241 = vrot.lane.b32.xlu0 %v917, 32
        %v1242 = vpop.permute.xlu0 %1241
        %1243 = vrot.lane.b32.xlu0 %v929, 32
        %v1244 = vpop.permute.xlu0 %1243
        %1245 = vrot.lane.b32.xlu0 %v941, 32
        %v1246 = vpop.permute.xlu0 %1245
        %1247 = vrot.lane.b32.xlu0 %v953, 32
        %v1248 = vpop.permute.xlu0 %1247
        %1249 = vrot.lane.b32.xlu0 %v965, 32
        %v1250 = vpop.permute.xlu0 %1249
        %1251 = vrot.lane.b32.xlu0 %v977, 32
        %v1252 = vpop.permute.xlu0 %1251
        %1253 = vrot.lane.b32.xlu0 %v989, 32
        %v1254 = vpop.permute.xlu0 %1253
        %1255 = vrot.lane.b32.xlu0 %v1001, 32
        %v1256 = vpop.permute.xlu0 %1255
        %1257 = vrot.lane.b32.xlu0 %v1013, 32
        %v1258 = vpop.permute.xlu0 %1257
        %1259 = vrot.lane.b32.xlu0 %v1025, 32
        %v1260 = vpop.permute.xlu0 %1259
        %1261 = vrot.lane.b32.xlu0 %v1037, 32
        %v1262 = vpop.permute.xlu0 %1261
        %1263 = vrot.lane.b32.xlu0 %v1049, 32
        %v1264 = vpop.permute.xlu0 %1263
        %1265 = vrot.lane.b32.xlu0 %v1061, 32
        %v1266 = vpop.permute.xlu0 %1265
        %1267 = vrot.lane.b32.xlu0 %v1073, 32
        %v1268 = vpop.permute.xlu0 %1267
        %1269 = vrot.lane.b32.xlu0 %v1238, 32
        %v1270 = vpop.permute.xlu0 %1269
        %v1271 = vrot.slane %v1191, 1
        %v1272 = vrot.slane %v1226, 1
        %v1273 = vsel %vm1106, %v1271, %v1272
        %1274 = vrot.lane.b32.xlu0 %v1112, 40
        %v1275 = vpop.permute.xlu0 %1274
        %1276 = vrot.lane.b32.xlu0 %v1115, 40
        %v1277 = vpop.permute.xlu0 %1276
        %1278 = vrot.lane.b32.xlu0 %v1118, 40
        %v1279 = vpop.permute.xlu0 %1278
        %1280 = vrot.lane.b32.xlu0 %v1121, 40
        %v1281 = vpop.permute.xlu0 %1280
        %1282 = vrot.lane.b32.xlu0 %v1124, 40
        %v1283 = vpop.permute.xlu0 %1282
        %1284 = vrot.lane.b32.xlu0 %v1127, 40
        %v1285 = vpop.permute.xlu0 %1284
        %1286 = vrot.lane.b32.xlu0 %v1130, 40
        %v1287 = vpop.permute.xlu0 %1286
        %1288 = vrot.lane.b32.xlu0 %v1133, 40
        %v1289 = vpop.permute.xlu0 %1288
        %1290 = vrot.lane.b32.xlu0 %v1136, 40
        %v1291 = vpop.permute.xlu0 %1290
        %1292 = vrot.lane.b32.xlu0 %v1139, 40
        %v1293 = vpop.permute.xlu0 %1292
        %1294 = vrot.lane.b32.xlu0 %v1142, 40
        %v1295 = vpop.permute.xlu0 %1294
        %1296 = vrot.lane.b32.xlu0 %v1145, 40
        %v1297 = vpop.permute.xlu0 %1296
        %1298 = vrot.lane.b32.xlu0 %v1148, 40
        %v1299 = vpop.permute.xlu0 %1298
        %1300 = vrot.lane.b32.xlu0 %v1151, 40
        %v1301 = vpop.permute.xlu0 %1300
        %1302 = vrot.lane.b32.xlu0 %v1154, 40
        %v1303 = vpop.permute.xlu0 %1302
        %1304 = vrot.lane.b32.xlu0 %v1273, 40
        %v1305 = vpop.permute.xlu0 %1304
        %v1308 = vunpack.c.l.b16 %v750
        %v1309 = vunpack.c.l.b16 %v751
        %v1310 = vpack.c.b16 %v1309, %v1308
        %1311 = vrot.lane.b32.xlu0 %v819, 48
        %v1312 = vpop.permute.xlu0 %1311
        %1313 = vrot.lane.b32.xlu0 %v820, 48
        %v1314 = vpop.permute.xlu0 %1313
        %1315 = vrot.lane.b32.xlu0 %v821, 48
        %v1316 = vpop.permute.xlu0 %1315
        %1317 = vrot.lane.b32.xlu0 %v822, 48
        %v1318 = vpop.permute.xlu0 %1317
        %1319 = vrot.lane.b32.xlu0 %v823, 48
        %v1320 = vpop.permute.xlu0 %1319
        %1321 = vrot.lane.b32.xlu0 %v824, 48
        %v1322 = vpop.permute.xlu0 %1321
        %1323 = vrot.lane.b32.xlu0 %v825, 48
        %v1324 = vpop.permute.xlu0 %1323
        %1325 = vrot.lane.b32.xlu0 %v826, 48
        %v1326 = vpop.permute.xlu0 %1325
        %1327 = vrot.lane.b32.xlu0 %v827, 48
        %v1328 = vpop.permute.xlu0 %1327
        %1329 = vrot.lane.b32.xlu0 %v828, 48
        %v1330 = vpop.permute.xlu0 %1329
        %1331 = vrot.lane.b32.xlu0 %v829, 48
        %v1332 = vpop.permute.xlu0 %1331
        %1333 = vrot.lane.b32.xlu0 %v830, 48
        %v1334 = vpop.permute.xlu0 %1333
        %1335 = vrot.lane.b32.xlu0 %v831, 48
        %v1336 = vpop.permute.xlu0 %1335
        %1337 = vrot.lane.b32.xlu0 %v832, 48
        %v1338 = vpop.permute.xlu0 %1337
        %1339 = vrot.lane.b32.xlu0 %v1191, 48
        %v1340 = vpop.permute.xlu0 %1339
        %1341 = vrot.lane.b32.xlu0 %v1310, 48
        %v1342 = vpop.permute.xlu0 %1341
        %v1344 = vunpack.c.l.b16 %v752
        %v1345 = vpack.c.b16 %v1344, %v1344
        %v1347 = vshrl.u32 %v1310, 16
        %v1349 = vshll.u32 %v1310, 16
        %v1351 = vrot.slane %v1349, 1
        %v1352 = vor.u32 %v1347, %v1351
        %v1354 = vshll.u32 %v1345, 16
        %v1356 = vrot.slane %v1354, 1
        %v1357 = vsel %vm881, %v1352, %v1356
        %1358 = vrot.lane.b32.xlu0 %v917, 56
        %v1359 = vpop.permute.xlu0 %1358
        %1360 = vrot.lane.b32.xlu0 %v929, 56
        %v1361 = vpop.permute.xlu0 %1360
        %1362 = vrot.lane.b32.xlu0 %v941, 56
        %v1363 = vpop.permute.xlu0 %1362
        %1364 = vrot.lane.b32.xlu0 %v953, 56
        %v1365 = vpop.permute.xlu0 %1364
        %1366 = vrot.lane.b32.xlu0 %v965, 56
        %v1367 = vpop.permute.xlu0 %1366
        %1368 = vrot.lane.b32.xlu0 %v977, 56
        %v1369 = vpop.permute.xlu0 %1368
        %1370 = vrot.lane.b32.xlu0 %v989, 56
        %v1371 = vpop.permute.xlu0 %1370
        %1372 = vrot.lane.b32.xlu0 %v1001, 56
        %v1373 = vpop.permute.xlu0 %1372
        %1374 = vrot.lane.b32.xlu0 %v1013, 56
        %v1375 = vpop.permute.xlu0 %1374
        %1376 = vrot.lane.b32.xlu0 %v1025, 56
        %v1377 = vpop.permute.xlu0 %1376
        %1378 = vrot.lane.b32.xlu0 %v1037, 56
        %v1379 = vpop.permute.xlu0 %1378
        %1380 = vrot.lane.b32.xlu0 %v1049, 56
        %v1381 = vpop.permute.xlu0 %1380
        %1382 = vrot.lane.b32.xlu0 %v1061, 56
        %v1383 = vpop.permute.xlu0 %1382
        %1384 = vrot.lane.b32.xlu0 %v1073, 56
        %v1385 = vpop.permute.xlu0 %1384
        %1386 = vrot.lane.b32.xlu0 %v1238, 56
        %v1387 = vpop.permute.xlu0 %1386
        %1388 = vrot.lane.b32.xlu0 %v1357, 56
        %v1389 = vpop.permute.xlu0 %1388
        %v1390 = vrot.slane %v1310, 1
        %v1391 = vrot.slane %v1345, 1
        %v1392 = vsel %vm1106, %v1390, %v1391
        %1393 = vrot.lane.b32.xlu0 %v1115, 64
        %v1394 = vpop.permute.xlu0 %1393
        %1395 = vrot.lane.b32.xlu0 %v1118, 64
        %v1396 = vpop.permute.xlu0 %1395
        %1397 = vrot.lane.b32.xlu0 %v1121, 64
        %v1398 = vpop.permute.xlu0 %1397
        %1399 = vrot.lane.b32.xlu0 %v1124, 64
        %v1400 = vpop.permute.xlu0 %1399
        %1401 = vrot.lane.b32.xlu0 %v1127, 64
        %v1402 = vpop.permute.xlu0 %1401
        %1403 = vrot.lane.b32.xlu0 %v1130, 64
        %v1404 = vpop.permute.xlu0 %1403
        %1405 = vrot.lane.b32.xlu0 %v1133, 64
        %v1406 = vpop.permute.xlu0 %1405
        %1407 = vrot.lane.b32.xlu0 %v1136, 64
        %v1408 = vpop.permute.xlu0 %1407
        %1409 = vrot.lane.b32.xlu0 %v1139, 64
        %v1410 = vpop.permute.xlu0 %1409
        %1411 = vrot.lane.b32.xlu0 %v1142, 64
        %v1412 = vpop.permute.xlu0 %1411
        %1413 = vrot.lane.b32.xlu0 %v1145, 64
        %v1414 = vpop.permute.xlu0 %1413
        %1415 = vrot.lane.b32.xlu0 %v1148, 64
        %v1416 = vpop.permute.xlu0 %1415
        %1417 = vrot.lane.b32.xlu0 %v1151, 64
        %v1418 = vpop.permute.xlu0 %1417
        %1419 = vrot.lane.b32.xlu0 %v1154, 64
        %v1420 = vpop.permute.xlu0 %1419
        %1421 = vrot.lane.b32.xlu0 %v1273, 64
        %v1422 = vpop.permute.xlu0 %1421
        %1423 = vrot.lane.b32.xlu0 %v1392, 64
        %v1424 = vpop.permute.xlu0 %1423
        %vm1425 = vcmask 64512
        %v1427 = vsel %vm1425, %v817, %v1075
        %v1429 = vsel %vm1425, %v818, %v1077
        %v1431 = vsel %vm1425, %v819, %v1079
        %v1433 = vsel %vm1425, %v820, %v1081
        %v1435 = vsel %vm1425, %v821, %v1083
        %v1437 = vsel %vm1425, %v822, %v1085
        %v1439 = vsel %vm1425, %v823, %v1087
        %v1441 = vsel %vm1425, %v824, %v1089
        %v1443 = vsel %vm1425, %v825, %v1091
        %v1445 = vsel %vm1425, %v826, %v1093
        %v1447 = vsel %vm1425, %v827, %v1095
        %v1449 = vsel %vm1425, %v828, %v1097
        %v1451 = vsel %vm1425, %v829, %v1099
        %v1453 = vsel %vm1425, %v830, %v1101
        %v1455 = vsel %vm1425, %v831, %v1103
        %v1457 = vsel %vm1425, %v832, %v1105
        %vm1458 = vcmask 130048
        %v1460 = vsel %vm1458, %v1427, %v1156
        %v1462 = vsel %vm1458, %v1429, %v1158
        %v1464 = vsel %vm1458, %v1431, %v1160
        %v1466 = vsel %vm1458, %v1433, %v1162
        %v1468 = vsel %vm1458, %v1435, %v1164
        %v1470 = vsel %vm1458, %v1437, %v1166
        %v1472 = vsel %vm1458, %v1439, %v1168
        %v1474 = vsel %vm1458, %v1441, %v1170
        %v1476 = vsel %vm1458, %v1443, %v1172
        %v1478 = vsel %vm1458, %v1445, %v1174
        %v1480 = vsel %vm1458, %v1447, %v1176
        %v1482 = vsel %vm1458, %v1449, %v1178
        %v1484 = vsel %vm1458, %v1451, %v1180
        %v1486 = vsel %vm1458, %v1453, %v1182
        %v1488 = vsel %vm1458, %v1455, %v1184
        %v1490 = vsel %vm1458, %v1457, %v1186
        %vm1491 = vcmask 195584
        %v1493 = vsel %vm1491, %v1460, %v1193
        %v1495 = vsel %vm1491, %v1462, %v1195
        %v1497 = vsel %vm1491, %v1464, %v1197
        %v1499 = vsel %vm1491, %v1466, %v1199
        %v1501 = vsel %vm1491, %v1468, %v1201
        %v1503 = vsel %vm1491, %v1470, %v1203
        %v1505 = vsel %vm1491, %v1472, %v1205
        %v1507 = vsel %vm1491, %v1474, %v1207
        %v1509 = vsel %vm1491, %v1476, %v1209
        %v1511 = vsel %vm1491, %v1478, %v1211
        %v1513 = vsel %vm1491, %v1480, %v1213
        %v1515 = vsel %vm1491, %v1482, %v1215
        %v1517 = vsel %vm1491, %v1484, %v1217
        %v1519 = vsel %vm1491, %v1486, %v1219
        %v1521 = vsel %vm1491, %v1488, %v1221
        %v1523 = vsel %vm1491, %v1490, %v1223
        %vm1524 = vcmask 261120
        %v1526 = vsel %vm1524, %v1493, %v1240
        %v1528 = vsel %vm1524, %v1495, %v1242
        %v1530 = vsel %vm1524, %v1497, %v1244
        %v1532 = vsel %vm1524, %v1499, %v1246
        %v1534 = vsel %vm1524, %v1501, %v1248
        %v1536 = vsel %vm1524, %v1503, %v1250
        %v1538 = vsel %vm1524, %v1505, %v1252
        %v1540 = vsel %vm1524, %v1507, %v1254
        %v1542 = vsel %vm1524, %v1509, %v1256
        %v1544 = vsel %vm1524, %v1511, %v1258
        %v1546 = vsel %vm1524, %v1513, %v1260
        %v1548 = vsel %vm1524, %v1515, %v1262
        %v1550 = vsel %vm1524, %v1517, %v1264
        %v1552 = vsel %vm1524, %v1519, %v1266
        %v1554 = vsel %vm1524, %v1521, %v1268
        %v1556 = vsel %vm1524, %v1523, %v1270
        %vm1557 = vcmask 326656
        %v1559 = vsel %vm1557, %v1526, %v1275
        %v1561 = vsel %vm1557, %v1528, %v1277
        %v1563 = vsel %vm1557, %v1530, %v1279
        %v1565 = vsel %vm1557, %v1532, %v1281
        %v1567 = vsel %vm1557, %v1534, %v1283
        %v1569 = vsel %vm1557, %v1536, %v1285
        %v1571 = vsel %vm1557, %v1538, %v1287
        %v1573 = vsel %vm1557, %v1540, %v1289
        %v1575 = vsel %vm1557, %v1542, %v1291
        %v1577 = vsel %vm1557, %v1544, %v1293
        %v1579 = vsel %vm1557, %v1546, %v1295
        %v1581 = vsel %vm1557, %v1548, %v1297
        %v1583 = vsel %vm1557, %v1550, %v1299
        %v1585 = vsel %vm1557, %v1552, %v1301
        %v1587 = vsel %vm1557, %v1554, %v1303
        %v1589 = vsel %vm1557, %v1556, %v1305
        %vm1590 = vcmask 392192
        %v1592 = vsel %vm1590, %v1559, %v1312
        %v1594 = vsel %vm1590, %v1561, %v1314
        %v1596 = vsel %vm1590, %v1563, %v1316
        %v1598 = vsel %vm1590, %v1565, %v1318
        %v1600 = vsel %vm1590, %v1567, %v1320
        %v1602 = vsel %vm1590, %v1569, %v1322
        %v1604 = vsel %vm1590, %v1571, %v1324
        %v1606 = vsel %vm1590, %v1573, %v1326
        %v1608 = vsel %vm1590, %v1575, %v1328
        %v1610 = vsel %vm1590, %v1577, %v1330
        %v1612 = vsel %vm1590, %v1579, %v1332
        %v1614 = vsel %vm1590, %v1581, %v1334
        %v1616 = vsel %vm1590, %v1583, %v1336
        %v1618 = vsel %vm1590, %v1585, %v1338
        %v1620 = vsel %vm1590, %v1587, %v1340
        %v1622 = vsel %vm1590, %v1589, %v1342
        %vm1623 = vcmask 457728
        %v1625 = vsel %vm1623, %v1592, %v1359
        %v1627 = vsel %vm1623, %v1594, %v1361
        %v1629 = vsel %vm1623, %v1596, %v1363
        %v1631 = vsel %vm1623, %v1598, %v1365
        %v1633 = vsel %vm1623, %v1600, %v1367
        %v1635 = vsel %vm1623, %v1602, %v1369
        %v1637 = vsel %vm1623, %v1604, %v1371
        %v1639 = vsel %vm1623, %v1606, %v1373
        %v1641 = vsel %vm1623, %v1608, %v1375
        %v1643 = vsel %vm1623, %v1610, %v1377
        %v1645 = vsel %vm1623, %v1612, %v1379
        %v1647 = vsel %vm1623, %v1614, %v1381
        %v1649 = vsel %vm1623, %v1616, %v1383
        %v1651 = vsel %vm1623, %v1618, %v1385
        %v1653 = vsel %vm1623, %v1620, %v1387
        %v1655 = vsel %vm1623, %v1622, %v1389
        %vm1656 = vcmask 523264
        %v1658 = vsel %vm1656, %v1625, %v1394
        %v1660 = vsel %vm1656, %v1627, %v1396
        %v1662 = vsel %vm1656, %v1629, %v1398
        %v1664 = vsel %vm1656, %v1631, %v1400
        %v1666 = vsel %vm1656, %v1633, %v1402
        %v1668 = vsel %vm1656, %v1635, %v1404
        %v1670 = vsel %vm1656, %v1637, %v1406
        %v1672 = vsel %vm1656, %v1639, %v1408
        %v1674 = vsel %vm1656, %v1641, %v1410
        %v1676 = vsel %vm1656, %v1643, %v1412
        %v1678 = vsel %vm1656, %v1645, %v1414
        %v1680 = vsel %vm1656, %v1647, %v1416
        %v1682 = vsel %vm1656, %v1649, %v1418
        %v1684 = vsel %vm1656, %v1651, %v1420
        %v1686 = vsel %vm1656, %v1653, %v1422
        %v1688 = vsel %vm1656, %v1655, %v1424
        %v1689 = vld [vmem:[%s1] sm:$0xf]
        %v1690 = vld [vmem:[%s1 + $0x4] sm:$0xf]
        %v1691 = vld [vmem:[%s1 + $0x8] sm:$0xf]
        %v1692 = vld [vmem:[%s1 + $0xc] sm:$0xf]
        %v1693 = vld [vmem:[%s1 + $0x10] sm:$0xf]
        %v1694 = vld [vmem:[%s1 + $0x14] sm:$0xf]
        %v1695 = vld [vmem:[%s1 + $0x18] sm:$0xf]
        %v1696 = vld [vmem:[%s1 + $0x1c] sm:$0xf]
        %v1697 = vld [vmem:[%s1 + $0x20] sm:$0xf]
        %v1698 = vld [vmem:[%s2] sm:$0x1]
        %v1700 = vlaneseq
        %v1701 = vshrl.u32 %v1700, 7
        %v1702 = vsub.s32 0, %v1701
        %v1703 = vrot.slane %v1698, %v1702
        %v1714 = vunpack.c.l.b16 %v1689
        %v1715 = vunpack.c.l.b16 %v1690
        %v1716 = vunpack.c.l.b16 %v1691
        %v1717 = vunpack.c.l.b16 %v1692
        %v1718 = vunpack.c.l.b16 %v1693
        %v1719 = vunpack.c.l.b16 %v1694
        %v1720 = vunpack.c.l.b16 %v1695
        %v1721 = vunpack.c.l.b16 %v1696
        %v1722 = vunpack.c.l.b16 %v1697
        %v1723 = vpack.c.b16 %v1715, %v1714
        %v1724 = vpack.c.b16 %v1717, %v1716
        %v1725 = vpack.c.b16 %v1719, %v1718
        %v1726 = vpack.c.b16 %v1721, %v1720
        %v1727 = vpack.c.b16 %v1722, %v1722
        %vm1732 = vcmask 588800
        %v1733 = vsel %vm1732, %v1658, 0
        %v1735 = vsel %vm1732, %v1660, 0
        %v1737 = vsel %vm1732, %v1662, 0
        %v1739 = vsel %vm1732, %v1664, 0
        %v1741 = vsel %vm1732, %v1666, 0
        %v1743 = vsel %vm1732, %v1668, 0
        %v1745 = vsel %vm1732, %v1670, 0
        %v1747 = vsel %vm1732, %v1672, 0
        %v1749 = vsel %vm1732, %v1674, 0
        %v1751 = vsel %vm1732, %v1676, 0
        %v1753 = vsel %vm1732, %v1678, 0
        %v1755 = vsel %vm1732, %v1680, 0
        %v1757 = vsel %vm1732, %v1682, 0
        %v1759 = vsel %vm1732, %v1684, 0
        %v1761 = vsel %vm1732, %v1686, 0
        %v1763 = vsel %vm1732, %v1688, 0
        %vm1765 = vcmask 1043456
        %v1767 = vsel %vm1765, %v1727, 0
        %1769 = vmatprep.subr.bf16.mxu0 0
        %1770 = vmatpush1.bf16.msra.mxu0 0
        %1771 = vmatprep.subr.bf16.mxu0 0
        %1772 = vmatpush1.bf16.msra.mxu0 0
        %1773 = vmatprep.subr.bf16.mxu0 0
        %1774 = vmatpush1.bf16.msra.mxu0 0
        %1775 = vmatprep.subr.bf16.mxu0 0
        %1776 = vmatpush1.bf16.msra.mxu0 %v1767
        %1777 = vmatprep.subr.bf16.mxu0 0
        %1778 = vmatpush1.bf16.msra.mxu0 %v1726
        %1779 = vmatprep.subr.bf16.mxu0 0
        %1780 = vmatpush1.bf16.msra.mxu0 %v1725
        %1781 = vmatprep.subr.bf16.mxu0 0
        %1782 = vmatpush1.bf16.msra.mxu0 %v1724
        %1783 = vmatprep.subr.bf16.mxu0 0
        %1784 = vmatpush1.bf16.msra.mxu0 %v1723
        %1785 = vmatprep.subr.bf16.mxu0 0
        %1786 = vmatpush2.bf16.msra.mxu0 0
        %1787 = vmatprep.subr.bf16.mxu0 0
        %1788 = vmatpush2.bf16.msra.mxu0 0
        %1789 = vmatprep.subr.bf16.mxu0 0
        %1790 = vmatpush2.bf16.msra.mxu0 0
        %1791 = vmatprep.subr.bf16.mxu0 0
        %1792 = vmatpush2.bf16.msra.mxu0 0
        %1793 = vmatprep.subr.bf16.mxu0 0
        %1794 = vmatpush2.bf16.msra.mxu0 0
        %1795 = vmatprep.subr.bf16.mxu0 0
        %1796 = vmatpush2.bf16.msra.mxu0 0
        %1797 = vmatprep.subr.bf16.mxu0 0
        %1798 = vmatpush2.bf16.msra.mxu0 0
        %1799 = vmatprep.subr.bf16.mxu0 0
        %1800 = vmatpush2.bf16.msra.mxu0 0
        %1801 = vmatprep.mubr.bf16.mxu0 0
        %1802 = vmatmul.mubr.bf16.gmra.mxu0 %v1733
        %v1803 = vpop.f32.mrf.mxu0
        %v1804 = vadd.f32 %v1703, %v1803
        %v1805 = vpop.f32.mrf.mxu0
        %v1806 = vpop.f32.mrf.mxu0
        %v1807 = vadd.f32 %v1703, %v1806
        %v1808 = vpop.f32.mrf.mxu0
        %1809 = vmatprep.mubr.bf16.mxu0 0
        %1810 = vmatmul.mubr.bf16.gmra.mxu0 %v1735
        %v1811 = vpop.f32.mrf.mxu0
        %v1812 = vadd.f32 %v1703, %v1811
        %v1813 = vpop.f32.mrf.mxu0
        %v1814 = vpop.f32.mrf.mxu0
        %v1815 = vadd.f32 %v1703, %v1814
        %v1816 = vpop.f32.mrf.mxu0
        %1817 = vmatprep.mubr.bf16.mxu0 0
        %1818 = vmatmul.mubr.bf16.gmra.mxu0 %v1737
        %v1819 = vpop.f32.mrf.mxu0
        %v1820 = vadd.f32 %v1703, %v1819
        %v1821 = vpop.f32.mrf.mxu0
        %v1822 = vpop.f32.mrf.mxu0
        %v1823 = vadd.f32 %v1703, %v1822
        %v1824 = vpop.f32.mrf.mxu0
        %1825 = vmatprep.mubr.bf16.mxu0 0
        %1826 = vmatmul.mubr.bf16.gmra.mxu0 %v1739
        %v1827 = vpop.f32.mrf.mxu0
        %v1828 = vadd.f32 %v1703, %v1827
        %v1829 = vpop.f32.mrf.mxu0
        %v1830 = vpop.f32.mrf.mxu0
        %v1831 = vadd.f32 %v1703, %v1830
        %v1832 = vpop.f32.mrf.mxu0
        %1833 = vmatprep.mubr.bf16.mxu0 0
        %1834 = vmatmul.mubr.bf16.gmra.mxu0 %v1741
        %v1835 = vpop.f32.mrf.mxu0
        %v1836 = vadd.f32 %v1703, %v1835
        %v1837 = vpop.f32.mrf.mxu0
        %v1838 = vpop.f32.mrf.mxu0
        %v1839 = vadd.f32 %v1703, %v1838
        %v1840 = vpop.f32.mrf.mxu0
        %1841 = vmatprep.mubr.bf16.mxu0 0
        %1842 = vmatmul.mubr.bf16.gmra.mxu0 %v1743
        %v1843 = vpop.f32.mrf.mxu0
        %v1844 = vadd.f32 %v1703, %v1843
        %v1845 = vpop.f32.mrf.mxu0
        %v1846 = vpop.f32.mrf.mxu0
        %v1847 = vadd.f32 %v1703, %v1846
        %v1848 = vpop.f32.mrf.mxu0
        %1849 = vmatprep.mubr.bf16.mxu0 0
        %1850 = vmatmul.mubr.bf16.gmra.mxu0 %v1745
        %v1851 = vpop.f32.mrf.mxu0
        %v1852 = vadd.f32 %v1703, %v1851
        %v1853 = vpop.f32.mrf.mxu0
        %v1854 = vpop.f32.mrf.mxu0
        %v1855 = vadd.f32 %v1703, %v1854
        %v1856 = vpop.f32.mrf.mxu0
        %1857 = vmatprep.mubr.bf16.mxu0 0
        %1858 = vmatmul.mubr.bf16.gmra.mxu0 %v1747
        %v1859 = vpop.f32.mrf.mxu0
        %v1860 = vadd.f32 %v1703, %v1859
        %v1861 = vpop.f32.mrf.mxu0
        %v1862 = vpop.f32.mrf.mxu0
        %v1863 = vadd.f32 %v1703, %v1862
        %v1864 = vpop.f32.mrf.mxu0
        %1865 = vmatprep.mubr.bf16.mxu0 0
        %1866 = vmatmul.mubr.bf16.gmra.mxu0 %v1749
        %v1867 = vpop.f32.mrf.mxu0
        %v1868 = vadd.f32 %v1703, %v1867
        %v1869 = vpop.f32.mrf.mxu0
        %v1870 = vpop.f32.mrf.mxu0
        %v1871 = vadd.f32 %v1703, %v1870
        %v1872 = vpop.f32.mrf.mxu0
        %1873 = vmatprep.mubr.bf16.mxu0 0
        %1874 = vmatmul.mubr.bf16.gmra.mxu0 %v1751
        %v1875 = vpop.f32.mrf.mxu0
        %v1876 = vadd.f32 %v1703, %v1875
        %v1877 = vpop.f32.mrf.mxu0
        %v1878 = vpop.f32.mrf.mxu0
        %v1879 = vadd.f32 %v1703, %v1878
        %v1880 = vpop.f32.mrf.mxu0
        %1881 = vmatprep.mubr.bf16.mxu0 0
        %1882 = vmatmul.mubr.bf16.gmra.mxu0 %v1753
        %v1883 = vpop.f32.mrf.mxu0
        %v1884 = vadd.f32 %v1703, %v1883
        %v1885 = vpop.f32.mrf.mxu0
        %v1886 = vpop.f32.mrf.mxu0
        %v1887 = vadd.f32 %v1703, %v1886
        %v1888 = vpop.f32.mrf.mxu0
        %1889 = vmatprep.mubr.bf16.mxu0 0
        %1890 = vmatmul.mubr.bf16.gmra.mxu0 %v1755
        %v1891 = vpop.f32.mrf.mxu0
        %v1892 = vadd.f32 %v1703, %v1891
        %v1893 = vpop.f32.mrf.mxu0
        %v1894 = vpop.f32.mrf.mxu0
        %v1895 = vadd.f32 %v1703, %v1894
        %v1896 = vpop.f32.mrf.mxu0
        %1897 = vmatprep.mubr.bf16.mxu0 0
        %1898 = vmatmul.mubr.bf16.gmra.mxu0 %v1757
        %v1899 = vpop.f32.mrf.mxu0
        %v1900 = vadd.f32 %v1703, %v1899
        %v1901 = vpop.f32.mrf.mxu0
        %v1902 = vpop.f32.mrf.mxu0
        %v1903 = vadd.f32 %v1703, %v1902
        %v1904 = vpop.f32.mrf.mxu0
        %1905 = vmatprep.mubr.bf16.mxu0 0
        %1906 = vmatmul.mubr.bf16.gmra.mxu0 %v1759
        %v1907 = vpop.f32.mrf.mxu0
        %v1908 = vadd.f32 %v1703, %v1907
        %v1909 = vpop.f32.mrf.mxu0
        %v1910 = vpop.f32.mrf.mxu0
        %v1911 = vadd.f32 %v1703, %v1910
        %v1912 = vpop.f32.mrf.mxu0
        %1913 = vmatprep.mubr.bf16.mxu0 0
        %1914 = vmatmul.mubr.bf16.gmra.mxu0 %v1761
        %v1915 = vpop.f32.mrf.mxu0
        %v1916 = vadd.f32 %v1703, %v1915
        %v1917 = vpop.f32.mrf.mxu0
        %v1918 = vpop.f32.mrf.mxu0
        %v1919 = vadd.f32 %v1703, %v1918
        %v1920 = vpop.f32.mrf.mxu0
        %1921 = vmatprep.mubr.bf16.mxu0 0
        %1922 = vmatmul.mubr.bf16.gmra.mxu0 %v1763
        %v1923 = vpop.f32.mrf.mxu0
        %v1924 = vadd.f32 %v1703, %v1923
        %v1925 = vpop.f32.mrf.mxu0
        %v1926 = vpop.f32.mrf.mxu0
        %v1927 = vadd.f32 %v1703, %v1926
        %v1928 = vpop.f32.mrf.mxu0
        %1929 = vdwg.mxu0
        %v1930 = vmax.f32 %v1804, 0.0
        %v1931 = vmax.f32 %v1807, 0.0
        %v1932 = vmax.f32 %v1812, 0.0
        %v1933 = vmax.f32 %v1815, 0.0
        %v1934 = vmax.f32 %v1820, 0.0
        %v1935 = vmax.f32 %v1823, 0.0
        %v1936 = vmax.f32 %v1828, 0.0
        %v1937 = vmax.f32 %v1831, 0.0
        %v1938 = vmax.f32 %v1836, 0.0
        %v1939 = vmax.f32 %v1839, 0.0
        %v1940 = vmax.f32 %v1844, 0.0
        %v1941 = vmax.f32 %v1847, 0.0
        %v1942 = vmax.f32 %v1852, 0.0
        %v1943 = vmax.f32 %v1855, 0.0
        %v1944 = vmax.f32 %v1860, 0.0
        %v1945 = vmax.f32 %v1863, 0.0
        %v1946 = vmax.f32 %v1868, 0.0
        %v1947 = vmax.f32 %v1871, 0.0
        %v1948 = vmax.f32 %v1876, 0.0
        %v1949 = vmax.f32 %v1879, 0.0
        %v1950 = vmax.f32 %v1884, 0.0
        %v1951 = vmax.f32 %v1887, 0.0
        %v1952 = vmax.f32 %v1892, 0.0
        %v1953 = vmax.f32 %v1895, 0.0
        %v1954 = vmax.f32 %v1900, 0.0
        %v1955 = vmax.f32 %v1903, 0.0
        %v1956 = vmax.f32 %v1908, 0.0
        %v1957 = vmax.f32 %v1911, 0.0
        %v1958 = vmax.f32 %v1916, 0.0
        %v1959 = vmax.f32 %v1919, 0.0
        %v1960 = vmax.f32 %v1924, 0.0
        %v1961 = vmax.f32 %v1927, 0.0
        %1962 = vst.msk [vmem:[#allocation3] sm:$0xff] %vm1656, %v1930
        %1963 = vst.msk [vmem:[#allocation3 + $0x8] sm:$0xff] %vm1656, %v1931
        %1964 = vst.msk [vmem:[#allocation3 + $0x10] sm:$0xff] %vm1656, %v1932
        %1965 = vst.msk [vmem:[#allocation3 + $0x18] sm:$0xff] %vm1656, %v1933
        %1966 = vst.msk [vmem:[#allocation3 + $0x20] sm:$0xff] %vm1656, %v1934
        %1967 = vst.msk [vmem:[#allocation3 + $0x28] sm:$0xff] %vm1656, %v1935
        %1968 = vst.msk [vmem:[#allocation3 + $0x30] sm:$0xff] %vm1656, %v1936
        %1969 = vst.msk [vmem:[#allocation3 + $0x38] sm:$0xff] %vm1656, %v1937
        %1970 = vst.msk [vmem:[#allocation3 + $0x40] sm:$0xff] %vm1656, %v1938
        %1971 = vst.msk [vmem:[#allocation3 + $0x48] sm:$0xff] %vm1656, %v1939
        %1972 = vst.msk [vmem:[#allocation3 + $0x50] sm:$0xff] %vm1656, %v1940
        %1973 = vst.msk [vmem:[#allocation3 + $0x58] sm:$0xff] %vm1656, %v1941
        %1974 = vst.msk [vmem:[#allocation3 + $0x60] sm:$0xff] %vm1656, %v1942
        %1975 = vst.msk [vmem:[#allocation3 + $0x68] sm:$0xff] %vm1656, %v1943
        %1976 = vst.msk [vmem:[#allocation3 + $0x70] sm:$0xff] %vm1656, %v1944
        %1977 = vst.msk [vmem:[#allocation3 + $0x78] sm:$0xff] %vm1656, %v1945
        %1978 = vst.msk [vmem:[#allocation3 + $0x80] sm:$0xff] %vm1656, %v1946
        %1979 = vst.msk [vmem:[#allocation3 + $0x88] sm:$0xff] %vm1656, %v1947
        %1980 = vst.msk [vmem:[#allocation3 + $0x90] sm:$0xff] %vm1656, %v1948
        %1981 = vst.msk [vmem:[#allocation3 + $0x98] sm:$0xff] %vm1656, %v1949
        %1982 = vst.msk [vmem:[#allocation3 + $0xa0] sm:$0xff] %vm1656, %v1950
        %1983 = vst.msk [vmem:[#allocation3 + $0xa8] sm:$0xff] %vm1656, %v1951
        %1984 = vst.msk [vmem:[#allocation3 + $0xb0] sm:$0xff] %vm1656, %v1952
        %1985 = vst.msk [vmem:[#allocation3 + $0xb8] sm:$0xff] %vm1656, %v1953
        %1986 = vst.msk [vmem:[#allocation3 + $0xc0] sm:$0xff] %vm1656, %v1954
        %1987 = vst.msk [vmem:[#allocation3 + $0xc8] sm:$0xff] %vm1656, %v1955
        %1988 = vst.msk [vmem:[#allocation3 + $0xd0] sm:$0xff] %vm1656, %v1956
        %1989 = vst.msk [vmem:[#allocation3 + $0xd8] sm:$0xff] %vm1656, %v1957
        %1990 = vst.msk [vmem:[#allocation3 + $0xe0] sm:$0xff] %vm1656, %v1958
        %1991 = vst.msk [vmem:[#allocation3 + $0xe8] sm:$0xff] %vm1656, %v1959
        %1992 = vst.msk [vmem:[#allocation3 + $0xf0] sm:$0xff] %vm1656, %v1960
        %1993 = vst.msk [vmem:[#allocation3 + $0xf8] sm:$0xff] %vm1656, %v1961
        %v1994 = vld [vmem:[#allocation3] ss:$2 sm:$0xff]
        %s1995 = scalar_lea.vmem [#allocation3], 16
        %v1996 = vld [vmem:[%s1995] ss:$2 sm:$0xff]
        %s1997 = scalar_lea.vmem [#allocation3], 32
        %v1998 = vld [vmem:[%s1997] ss:$2 sm:$0xff]
        %s1999 = scalar_lea.vmem [#allocation3], 48
        %v2000 = vld [vmem:[%s1999] ss:$2 sm:$0xff]
        %s2001 = scalar_lea.vmem [#allocation3], 64
        %v2002 = vld [vmem:[%s2001] ss:$2 sm:$0xff]
        %s2003 = scalar_lea.vmem [#allocation3], 80
        %v2004 = vld [vmem:[%s2003] ss:$2 sm:$0xff]
        %s2005 = scalar_lea.vmem [#allocation3], 96
        %v2006 = vld [vmem:[%s2005] ss:$2 sm:$0xff]
        %s2007 = scalar_lea.vmem [#allocation3], 112
        %v2008 = vld [vmem:[%s2007] ss:$2 sm:$0xff]
        %s2009 = scalar_lea.vmem [#allocation3], 128
        %v2010 = vld [vmem:[%s2009] ss:$2 sm:$0xff]
        %s2011 = scalar_lea.vmem [#allocation3], 144
        %v2012 = vld [vmem:[%s2011] ss:$2 sm:$0xff]
        %s2013 = scalar_lea.vmem [#allocation3], 160
        %v2014 = vld [vmem:[%s2013] ss:$2 sm:$0xff]
        %s2015 = scalar_lea.vmem [#allocation3], 176
        %v2016 = vld [vmem:[%s2015] ss:$2 sm:$0xff]
        %s2017 = scalar_lea.vmem [#allocation3], 192
        %v2018 = vld [vmem:[%s2017] ss:$2 sm:$0xff]
        %s2019 = scalar_lea.vmem [#allocation3], 208
        %v2020 = vld [vmem:[%s2019] ss:$2 sm:$0xff]
        %s2021 = scalar_lea.vmem [#allocation3], 224
        %v2022 = vld [vmem:[%s2021] ss:$2 sm:$0xff]
        %s2023 = scalar_lea.vmem [#allocation3], 240
        %v2024 = vld [vmem:[%s2023] ss:$2 sm:$0xff]
        %s2025 = scalar_lea.vmem [#allocation3], 1
        %v2026 = vld [vmem:[%s2025] ss:$2 sm:$0xff]
        %s2027 = scalar_lea.vmem [#allocation3], 17
        %v2028 = vld [vmem:[%s2027] ss:$2 sm:$0xff]
        %s2029 = scalar_lea.vmem [#allocation3], 33
        %v2030 = vld [vmem:[%s2029] ss:$2 sm:$0xff]
        %s2031 = scalar_lea.vmem [#allocation3], 49
        %v2032 = vld [vmem:[%s2031] ss:$2 sm:$0xff]
        %s2033 = scalar_lea.vmem [#allocation3], 65
        %v2034 = vld [vmem:[%s2033] ss:$2 sm:$0xff]
        %s2035 = scalar_lea.vmem [#allocation3], 81
        %v2036 = vld [vmem:[%s2035] ss:$2 sm:$0xff]
        %s2037 = scalar_lea.vmem [#allocation3], 97
        %v2038 = vld [vmem:[%s2037] ss:$2 sm:$0xff]
        %s2039 = scalar_lea.vmem [#allocation3], 113
        %v2040 = vld [vmem:[%s2039] ss:$2 sm:$0xff]
        %s2041 = scalar_lea.vmem [#allocation3], 129
        %v2042 = vld [vmem:[%s2041] ss:$2 sm:$0xff]
        %s2043 = scalar_lea.vmem [#allocation3], 145
        %v2044 = vld [vmem:[%s2043] ss:$2 sm:$0xff]
        %s2045 = scalar_lea.vmem [#allocation3], 161
        %v2046 = vld [vmem:[%s2045] ss:$2 sm:$0xff]
        %s2047 = scalar_lea.vmem [#allocation3], 177
        %v2048 = vld [vmem:[%s2047] ss:$2 sm:$0xff]
        %s2049 = scalar_lea.vmem [#allocation3], 193
        %v2050 = vld [vmem:[%s2049] ss:$2 sm:$0xff]
        %s2051 = scalar_lea.vmem [#allocation3], 209
        %v2052 = vld [vmem:[%s2051] ss:$2 sm:$0xff]
        %s2053 = scalar_lea.vmem [#allocation3], 225
        %v2054 = vld [vmem:[%s2053] ss:$2 sm:$0xff]
        %s2055 = scalar_lea.vmem [#allocation3], 241
        %v2056 = vld [vmem:[%s2055] ss:$2 sm:$0xff]
        %v2057 = vmax.f32 %v1994, %v2026
        %v2058 = vmax.f32 %v1996, %v2028
        %v2059 = vmax.f32 %v1998, %v2030
        %v2060 = vmax.f32 %v2000, %v2032
        %v2061 = vmax.f32 %v2002, %v2034
        %v2062 = vmax.f32 %v2004, %v2036
        %v2063 = vmax.f32 %v2006, %v2038
        %v2064 = vmax.f32 %v2008, %v2040
        %v2065 = vmax.f32 %v2010, %v2042
        %v2066 = vmax.f32 %v2012, %v2044
        %v2067 = vmax.f32 %v2014, %v2046
        %v2068 = vmax.f32 %v2016, %v2048
        %v2069 = vmax.f32 %v2018, %v2050
        %v2070 = vmax.f32 %v2020, %v2052
        %v2071 = vmax.f32 %v2022, %v2054
        %v2072 = vmax.f32 %v2024, %v2056
        %v2073 = vmax.f32 %v2057, %v2058
        %v2074 = vmax.f32 %v2059, %v2060
        %v2075 = vmax.f32 %v2061, %v2062
        %v2076 = vmax.f32 %v2063, %v2064
        %v2077 = vmax.f32 %v2065, %v2066
        %v2078 = vmax.f32 %v2067, %v2068
        %v2079 = vmax.f32 %v2069, %v2070
        %v2080 = vmax.f32 %v2071, %v2072
        %v2081 = vpack.c.bf16 %v2073, %v2073
        %v2082 = vpack.c.bf16 %v2074, %v2074
        %v2083 = vpack.c.bf16 %v2075, %v2075
        %v2084 = vpack.c.bf16 %v2076, %v2076
        %v2085 = vpack.c.bf16 %v2077, %v2077
        %v2086 = vpack.c.bf16 %v2078, %v2078
        %v2087 = vpack.c.bf16 %v2079, %v2079
        %v2088 = vpack.c.bf16 %v2080, %v2080
        %vm2089 = vcmask 519168
        %2090 = vst.msk [vmem:[%s163] sm:$0xf] %vm2089, %v2081
        %2091 = vst.msk [vmem:[%s163 + $0x4] sm:$0xf] %vm2089, %v2082
        %2092 = vst.msk [vmem:[%s163 + $0x8] sm:$0xf] %vm2089, %v2083
        %2093 = vst.msk [vmem:[%s163 + $0xc] sm:$0xf] %vm2089, %v2084
        %2094 = vst.msk [vmem:[%s163 + $0x10] sm:$0xf] %vm2089, %v2085
        %2095 = vst.msk [vmem:[%s163 + $0x14] sm:$0xf] %vm2089, %v2086
        %2096 = vst.msk [vmem:[%s163 + $0x18] sm:$0xf] %vm2089, %v2087
        %2097 = vst.msk [vmem:[%s163 + $0x1c] sm:$0xf] %vm2089, %v2088
        %s2098 = sand.u32 %s93, 1
        %s2099 = scalar_lea.sflag [#allocation5], %s2098
        %s2100 = sand.u32 %s93, 1
        %s2101 = smul.addr %s2100, 32
        %s2102 = scalar_lea.vmem [#allocation4], %s2101
        // Predicated region
        $region33: #{tpu_custom_call.1} parent=31 // pred_check
          %p2103 = pneg %p103
        $region34: #{tpu_custom_call.1} parent=31 // pred_check_branch
          %2105 = sbr.rel (%p2103) target = $region36
        $region35: #{tpu_custom_call.1} parent=31 // pred_region
          %s2107 = ssub.s32 512, 512
          %2108 = vsyncadd %s2099, %s2107
          %s2109 = smul.addr %s17, 8
          %s2110 = smul.addr %s2109, 64
          %s2111 = scalar_lea.hbm %s3, %s2110
          %s2112 = sshll.u32 %s2102, 4
          %s2113 = int_to_ptr.vmem [resolvable:$true] %s2112
          %2118 = dma.vmem_to_hbm [thread:$0]  %s2113, 512, %s2111, %s2099, 64, 64, 4
        $region36: #{tpu_custom_call.1} parent=31 // pred_fallthru
          _
      $region32: #{tpu_custom_call.1} parent=5 // pred_fallthru
        _
      %p2119 = scmp.le.s32.totalorder 2, %s12
      // Predicated region
      $region37: #{tpu_custom_call.1} parent=5 // pred_check
        %p2120 = pneg %p2119
      $region38: #{tpu_custom_call.1} parent=5 // pred_check_branch
        %2122 = sbr.rel (%p2120) target = $region40
      $region39: #{tpu_custom_call.1} parent=5 // pred_region
        %s2123 = ssub.s32 %s12, 2
        // Predicated region
        $region41: #{tpu_custom_call.1} parent=39 // pred_check
          %p2124 = pneg %p109
        $region42: #{tpu_custom_call.1} parent=39 // pred_check_branch
          %2126 = sbr.rel (%p2124) target = $region44
        $region43: #{tpu_custom_call.1} parent=39 // pred_region
          %s2127 = sand.u32 %s94, 1
          %s2128 = scalar_lea.sflag [#allocation5], %s2127
          %s2129 = sand.u32 %s94, 1
          %s2130 = smul.addr %s2129, 32
          %s2131 = scalar_lea.vmem [#allocation4], %s2130
          %2132 = dma.done %s2128, 512
        $region44: #{tpu_custom_call.1} parent=39 // pred_fallthru
          _
      $region40: #{tpu_custom_call.1} parent=5 // pred_fallthru
        _
    $region6: #{tpu_custom_call.1} parent=1 // loop_footer
      %s16 = sadd.s32 1, %s12
    $region7: #{tpu_custom_call.1} parent=1 // loop_footer_branch
      %11 = sbr.rel target = $region3
    $region8: #{tpu_custom_call.1} parent=1 // loop_exit
      _
    %2133 = vsyncpa [#allocation5], 1
    %s2134 = scalar_lea.sflag [#allocation5], 1
    %2135 = vsyncpa %s2134, 1

</llo_original>
